<compile_context>
chip_gen: v6e
topology: v6e:2x2x1
jax: 0.10.0
libtpu: 0.0.40
codegen_flags: <defaults>
</compile_context>

<pallas_src>
import jax
import jax.numpy as jnp
from jax.experimental import pallas as pl
from jax.experimental.pallas import tpu as pltpu


def lstm_predictor_kernel(
    x_ref,            # (T*B, D)   time-major, flattened
    wih0_ref,         # (D, 4H)    W_ih_l0.T, gate cols (i,f,o,g)
    whh0_ref,         # (H, 4H)    W_hh_l0.T, gate cols (i,f,o,g)
    b0_ref,           # (1, 4H)    b_ih_l0 + b_hh_l0, gate cols (i,f,o,g)
    w1_ref,           # (2H, 4H)   [W_ih_l1.T ; W_hh_l1.T] stacked, gate cols (i,f,o,g)
    b1_ref,           # (1, 4H)    b_ih_l1 + b_hh_l1, gate cols (i,f,o,g)
    wfc1_ref,         # (H, H//2)  fc1.weight.T
    bfc1_ref,         # (1, H//2)
    wfc2_ref,         # (H//2, 1)  fc2.weight.T
    bfc2_ref,         # (1, 1)
    out_ref,          # (B, 1)
):
    B = out_ref.shape[0]
    TB, D = x_ref.shape
    T = TB // B
    H4 = whh0_ref.shape[1]
    H = H4 // 4

    whh0 = whh0_ref[...]
    w1 = w1_ref[...]

    # ---- Hoisted layer-0 input projection: one big matmul, bias folded in. ----
    x_proj = (
        jnp.dot(x_ref[...].astype(jnp.float32), wih0_ref[...],
                preferred_element_type=jnp.float32)
        + b0_ref[...]
    )                                                    # (T*B, 4H)

    # Hoisted bias broadcast for layer 1 (done once, not per step).
    b1b = jnp.broadcast_to(b1_ref[...], (B, H4))

    def cell(gates, c):
        # Gate columns are ordered (i, f, o, g): one full-width sigmoid pass
        # covers all three sigmoid gates; tanh only on the trailing H lanes.
        sig = jax.nn.sigmoid(gates)
        i = sig[:, 0 * H:1 * H]
        f = sig[:, 1 * H:2 * H]
        o = sig[:, 2 * H:3 * H]
        g = jnp.tanh(gates[:, 3 * H:4 * H])
        c_new = f * c + i * g
        h_new = o * jnp.tanh(c_new)
        return h_new, c_new

    zeros = jnp.zeros((B, H), jnp.float32)
    h0, c0, h1, c1 = zeros, zeros, zeros, zeros

    # T is small and static: fully unroll the recurrence (2 MXU pushes per step).
    for t in range(T):
        x_t = x_proj[t * B:(t + 1) * B, :]                                   # (B, 4H)
        gates0 = x_t + jnp.dot(h0, whh0, preferred_element_type=jnp.float32)
        h0, c0 = cell(gates0, c0)                                            # layer 0
        # dropout(p=0.2) between layers is identity in eval mode
        lhs1 = jnp.concatenate([h0, h1], axis=-1)                            # (B, 2H)
        gates1 = jnp.dot(lhs1, w1, preferred_element_type=jnp.float32) + b1b
        h1, c1 = cell(gates1, c1)                                            # layer 1

    # ---- FC head on the last timestep of the top LSTM layer. ----
    hdd = jnp.dot(h1, wfc1_ref[...], preferred_element_type=jnp.float32) + bfc1_ref[...]
    hdd = jnp.maximum(hdd, 0.0)                 # ReLU (dropout = identity at inference)
    y = jnp.dot(hdd, wfc2_ref[...], preferred_element_type=jnp.float32) + bfc2_ref[...]
    out_ref[...] = y.astype(out_ref.dtype)


def lstm_predictor_forward(x, params):
    """x: (B, T, D) float32, batch_first like the PyTorch module."""
    B, T, D = x.shape
    # Layout plumbing outside the kernel: time-major, flattened to (T*B, D).
    x_flat = jnp.transpose(x, (1, 0, 2)).reshape(T * B, D)
    n_in = 1 + len(params)
    vmem = pl.BlockSpec(memory_space=pltpu.MemorySpace.VMEM)
    return pl.pallas_call(
        lstm_predictor_kernel,
        out_shape=jax.ShapeDtypeStruct((B, 1), jnp.float32),
        in_specs=[vmem] * n_in,
        out_specs=vmem,
    )(x_flat, *params)


def init_params(key, input_dim, hidden_dim):
    """Deterministic synthetic parameters with PyTorch nn.LSTM / nn.Linear shapes,
    pre-transposed / gate-permuted / fused for the kernel."""
    H = hidden_dim
    ks = jax.random.split(key, 12)
    s = 0.1

    def rnd(k, shape):
        return s * jax.random.normal(k, shape, jnp.float32)

    # nn.LSTM layer 0: weight_ih_l0 (4H, D), weight_hh_l0 (4H, H), biases (4H,)
    w_ih_l0 = rnd(ks[0], (4 * H, input_dim))
    w_hh_l0 = rnd(ks[1], (4 * H, H))
    b_ih_l0 = rnd(ks[2], (4 * H,))
    b_hh_l0 = rnd(ks[3], (4 * H,))
    # layer 1: weight_ih_l1 (4H, H)
    w_ih_l1 = rnd(ks[4], (4 * H, H))
    w_hh_l1 = rnd(ks[5], (4 * H, H))
    b_ih_l1 = rnd(ks[6], (4 * H,))
    b_hh_l1 = rnd(ks[7], (4 * H,))
    # fc: Linear(H, H//2), Linear(H//2, 1)
    w_fc1 = rnd(ks[8], (H // 2, H))
    b_fc1 = rnd(ks[9], (H // 2,))
    w_fc2 = rnd(ks[10], (1, H // 2))
    b_fc2 = rnd(ks[11], (1,))

    # Permute gate columns from PyTorch order (i, f, g, o) to kernel order (i, f, o, g)
    # so the three sigmoid gates occupy one contiguous lane range.
    perm = jnp.concatenate([
        jnp.arange(0, 2 * H),        # i, f
        jnp.arange(3 * H, 4 * H),    # o
        jnp.arange(2 * H, 3 * H),    # g
    ])

    def reorder(w_t):                 # permute the trailing 4H axis
        return w_t[..., perm]

    wih0 = reorder(w_ih_l0.T)                            # (D, 4H)
    whh0 = reorder(w_hh_l0.T)                            # (H, 4H)
    b0 = reorder((b_ih_l0 + b_hh_l0)[None, :])           # (1, 4H)
    wih1 = reorder(w_ih_l1.T)                            # (H, 4H)
    whh1 = reorder(w_hh_l1.T)                            # (H, 4H)
    b1 = reorder((b_ih_l1 + b_hh_l1)[None, :])           # (1, 4H)
    w1_cat = jnp.concatenate([wih1, whh1], axis=0)       # (2H, 4H)  fused ih/hh weight

    params = (
        wih0, whh0, b0,
        w1_cat, b1,
        w_fc1.T,                                         # (H, H//2)
        b_fc1.reshape(1, H // 2),                        # (1, H//2)
        w_fc2.T,                                         # (H//2, 1)
        b_fc2.reshape(1, 1),                             # (1, 1)
    )
    return params


if __name__ == "__main__":
    BATCH, SEQ, INPUT_DIM, HIDDEN = 2, 8, 4, 32

    key = jax.random.PRNGKey(0)
    kx, kp = jax.random.split(key)
    x = jax.random.normal(kx, (BATCH, SEQ, INPUT_DIM), jnp.float32)
    params = init_params(kp, INPUT_DIM, HIDDEN)

    out = lstm_predictor_forward(x, params)
    out = jax.block_until_ready(out)
    assert out.shape == (BATCH, 1) and out.dtype == jnp.float32
    print("KERNEL_OK")
</pallas_src>

<mosaic_0001>
module attributes {stable_mosaic.version = 11 : i64} {
  func.func @lstm_predictor_kernel(%arg0: memref<16x4xf32, #tpu.memory_space<vmem>>, %arg1: memref<4x128xf32, #tpu.memory_space<vmem>>, %arg2: memref<32x128xf32, #tpu.memory_space<vmem>>, %arg3: memref<1x128xf32, #tpu.memory_space<vmem>>, %arg4: memref<64x128xf32, #tpu.memory_space<vmem>>, %arg5: memref<1x128xf32, #tpu.memory_space<vmem>>, %arg6: memref<32x16xf32, #tpu.memory_space<vmem>>, %arg7: memref<1x16xf32, #tpu.memory_space<vmem>>, %arg8: memref<16x1xf32, #tpu.memory_space<vmem>>, %arg9: memref<1x1xf32, #tpu.memory_space<vmem>>, %arg10: memref<2x1xf32, #tpu.memory_space<vmem>>) attributes {dimension_semantics = [], scalar_prefetch = 0 : i64, scratch_operands = 0 : i64, tpu.core_type = #tpu.core_type<tc>} {
    %c0 = arith.constant 0 : index
    %c0_0 = arith.constant 0 : index
    %0 = vector.load %arg2[%c0, %c0_0] : memref<32x128xf32, #tpu.memory_space<vmem>>, vector<32x128xf32>
    %c0_1 = arith.constant 0 : index
    %c0_2 = arith.constant 0 : index
    %1 = vector.load %arg4[%c0_1, %c0_2] : memref<64x128xf32, #tpu.memory_space<vmem>>, vector<64x128xf32>
    %c0_3 = arith.constant 0 : index
    %c0_4 = arith.constant 0 : index
    %2 = vector.load %arg0[%c0_3, %c0_4] : memref<16x4xf32, #tpu.memory_space<vmem>>, vector<16x4xf32>
    %c0_5 = arith.constant 0 : index
    %c0_6 = arith.constant 0 : index
    %3 = vector.load %arg1[%c0_5, %c0_6] : memref<4x128xf32, #tpu.memory_space<vmem>>, vector<4x128xf32>
    %cst = arith.constant dense<0.000000e+00> : vector<16x128xf32>
    %4 = tpu.matmul %2, %3, %cst {dimension_numbers = #tpu.dot_dimension_numbers<[1], [0], [0], [1], [0, 0, 1, 1], [], []>} : vector<16x4xf32>, vector<4x128xf32>, vector<16x128xf32> -> vector<16x128xf32>
    %c0_7 = arith.constant 0 : index
    %c0_8 = arith.constant 0 : index
    %5 = vector.load %arg3[%c0_7, %c0_8] : memref<1x128xf32, #tpu.memory_space<vmem>>, vector<1x128xf32>
    %6 = vector.broadcast %5 : vector<1x128xf32> to vector<16x128xf32>
    %7 = arith.addf %4, %6 : vector<16x128xf32>
    %c0_9 = arith.constant 0 : index
    %c0_10 = arith.constant 0 : index
    %8 = vector.load %arg5[%c0_9, %c0_10] : memref<1x128xf32, #tpu.memory_space<vmem>>, vector<1x128xf32>
    %9 = vector.shape_cast %8 : vector<1x128xf32> to vector<1x128xf32>
    %10 = vector.broadcast %9 : vector<1x128xf32> to vector<2x128xf32>
    %cst_11 = arith.constant 0.000000e+00 : f32
    %11 = vector.broadcast %cst_11 : f32 to vector<2x32xf32>
    %12 = vector.extract_strided_slice %7 {offsets = [0, 0], sizes = [2, 128], strides = [1, 1]} : vector<16x128xf32> to vector<2x128xf32>
    %cst_12 = arith.constant dense<0.000000e+00> : vector<2x128xf32>
    %13 = tpu.matmul %11, %0, %cst_12 {dimension_numbers = #tpu.dot_dimension_numbers<[1], [0], [0], [1], [0, 0, 1, 1], [], []>} : vector<2x32xf32>, vector<32x128xf32>, vector<2x128xf32> -> vector<2x128xf32>
    %14 = arith.addf %12, %13 : vector<2x128xf32>
    %15 = arith.negf %14 : vector<2x128xf32>
    %16 = math.exp %15 : vector<2x128xf32>
    %cst_13 = arith.constant 1.000000e+00 : f32
    %17 = vector.broadcast %cst_13 : f32 to vector<2x128xf32>
    %18 = arith.addf %17, %16 : vector<2x128xf32>
    %19 = arith.divf %17, %18 : vector<2x128xf32>
    %20 = vector.extract_strided_slice %19 {offsets = [0, 0], sizes = [2, 32], strides = [1, 1]} : vector<2x128xf32> to vector<2x32xf32>
    %21 = vector.extract_strided_slice %19 {offsets = [0, 32], sizes = [2, 32], strides = [1, 1]} : vector<2x128xf32> to vector<2x32xf32>
    %22 = vector.extract_strided_slice %19 {offsets = [0, 64], sizes = [2, 32], strides = [1, 1]} : vector<2x128xf32> to vector<2x32xf32>
    %23 = vector.extract_strided_slice %14 {offsets = [0, 96], sizes = [2, 32], strides = [1, 1]} : vector<2x128xf32> to vector<2x32xf32>
    %24 = math.tanh %23 : vector<2x32xf32>
    %25 = arith.mulf %21, %11 : vector<2x32xf32>
    %26 = arith.mulf %20, %24 : vector<2x32xf32>
    %27 = arith.addf %25, %26 : vector<2x32xf32>
    %28 = math.tanh %27 : vector<2x32xf32>
    %29 = arith.mulf %22, %28 : vector<2x32xf32>
    %30 = tpu.concatenate %29, %11 in 1 : vector<2x32xf32>, vector<2x32xf32> -> vector<2x64xf32>
    %cst_14 = arith.constant dense<0.000000e+00> : vector<2x128xf32>
    %31 = tpu.matmul %30, %1, %cst_14 {dimension_numbers = #tpu.dot_dimension_numbers<[1], [0], [0], [1], [0, 0, 1, 1], [], []>} : vector<2x64xf32>, vector<64x128xf32>, vector<2x128xf32> -> vector<2x128xf32>
    %32 = arith.addf %31, %10 : vector<2x128xf32>
    %33 = arith.negf %32 : vector<2x128xf32>
    %34 = math.exp %33 : vector<2x128xf32>
    %cst_15 = arith.constant 1.000000e+00 : f32
    %35 = vector.broadcast %cst_15 : f32 to vector<2x128xf32>
    %36 = arith.addf %35, %34 : vector<2x128xf32>
    %37 = arith.divf %35, %36 : vector<2x128xf32>
    %38 = vector.extract_strided_slice %37 {offsets = [0, 0], sizes = [2, 32], strides = [1, 1]} : vector<2x128xf32> to vector<2x32xf32>
    %39 = vector.extract_strided_slice %37 {offsets = [0, 32], sizes = [2, 32], strides = [1, 1]} : vector<2x128xf32> to vector<2x32xf32>
    %40 = vector.extract_strided_slice %37 {offsets = [0, 64], sizes = [2, 32], strides = [1, 1]} : vector<2x128xf32> to vector<2x32xf32>
    %41 = vector.extract_strided_slice %32 {offsets = [0, 96], sizes = [2, 32], strides = [1, 1]} : vector<2x128xf32> to vector<2x32xf32>
    %42 = math.tanh %41 : vector<2x32xf32>
    %43 = arith.mulf %39, %11 : vector<2x32xf32>
    %44 = arith.mulf %38, %42 : vector<2x32xf32>
    %45 = arith.addf %43, %44 : vector<2x32xf32>
    %46 = math.tanh %45 : vector<2x32xf32>
    %47 = arith.mulf %40, %46 : vector<2x32xf32>
    %48 = vector.extract_strided_slice %7 {offsets = [2, 0], sizes = [2, 128], strides = [1, 1]} : vector<16x128xf32> to vector<2x128xf32>
    %cst_16 = arith.constant dense<0.000000e+00> : vector<2x128xf32>
    %49 = tpu.matmul %29, %0, %cst_16 {dimension_numbers = #tpu.dot_dimension_numbers<[1], [0], [0], [1], [0, 0, 1, 1], [], []>} : vector<2x32xf32>, vector<32x128xf32>, vector<2x128xf32> -> vector<2x128xf32>
    %50 = arith.addf %48, %49 : vector<2x128xf32>
    %51 = arith.negf %50 : vector<2x128xf32>
    %52 = math.exp %51 : vector<2x128xf32>
    %cst_17 = arith.constant 1.000000e+00 : f32
    %53 = vector.broadcast %cst_17 : f32 to vector<2x128xf32>
    %54 = arith.addf %53, %52 : vector<2x128xf32>
    %55 = arith.divf %53, %54 : vector<2x128xf32>
    %56 = vector.extract_strided_slice %55 {offsets = [0, 0], sizes = [2, 32], strides = [1, 1]} : vector<2x128xf32> to vector<2x32xf32>
    %57 = vector.extract_strided_slice %55 {offsets = [0, 32], sizes = [2, 32], strides = [1, 1]} : vector<2x128xf32> to vector<2x32xf32>
    %58 = vector.extract_strided_slice %55 {offsets = [0, 64], sizes = [2, 32], strides = [1, 1]} : vector<2x128xf32> to vector<2x32xf32>
    %59 = vector.extract_strided_slice %50 {offsets = [0, 96], sizes = [2, 32], strides = [1, 1]} : vector<2x128xf32> to vector<2x32xf32>
    %60 = math.tanh %59 : vector<2x32xf32>
    %61 = arith.mulf %57, %27 : vector<2x32xf32>
    %62 = arith.mulf %56, %60 : vector<2x32xf32>
    %63 = arith.addf %61, %62 : vector<2x32xf32>
    %64 = math.tanh %63 : vector<2x32xf32>
    %65 = arith.mulf %58, %64 : vector<2x32xf32>
    %66 = tpu.concatenate %65, %47 in 1 : vector<2x32xf32>, vector<2x32xf32> -> vector<2x64xf32>
    %cst_18 = arith.constant dense<0.000000e+00> : vector<2x128xf32>
    %67 = tpu.matmul %66, %1, %cst_18 {dimension_numbers = #tpu.dot_dimension_numbers<[1], [0], [0], [1], [0, 0, 1, 1], [], []>} : vector<2x64xf32>, vector<64x128xf32>, vector<2x128xf32> -> vector<2x128xf32>
    %68 = arith.addf %67, %10 : vector<2x128xf32>
    %69 = arith.negf %68 : vector<2x128xf32>
    %70 = math.exp %69 : vector<2x128xf32>
    %cst_19 = arith.constant 1.000000e+00 : f32
    %71 = vector.broadcast %cst_19 : f32 to vector<2x128xf32>
    %72 = arith.addf %71, %70 : vector<2x128xf32>
    %73 = arith.divf %71, %72 : vector<2x128xf32>
    %74 = vector.extract_strided_slice %73 {offsets = [0, 0], sizes = [2, 32], strides = [1, 1]} : vector<2x128xf32> to vector<2x32xf32>
    %75 = vector.extract_strided_slice %73 {offsets = [0, 32], sizes = [2, 32], strides = [1, 1]} : vector<2x128xf32> to vector<2x32xf32>
    %76 = vector.extract_strided_slice %73 {offsets = [0, 64], sizes = [2, 32], strides = [1, 1]} : vector<2x128xf32> to vector<2x32xf32>
    %77 = vector.extract_strided_slice %68 {offsets = [0, 96], sizes = [2, 32], strides = [1, 1]} : vector<2x128xf32> to vector<2x32xf32>
    %78 = math.tanh %77 : vector<2x32xf32>
    %79 = arith.mulf %75, %45 : vector<2x32xf32>
    %80 = arith.mulf %74, %78 : vector<2x32xf32>
    %81 = arith.addf %79, %80 : vector<2x32xf32>
    %82 = math.tanh %81 : vector<2x32xf32>
    %83 = arith.mulf %76, %82 : vector<2x32xf32>
    %84 = vector.extract_strided_slice %7 {offsets = [4, 0], sizes = [2, 128], strides = [1, 1]} : vector<16x128xf32> to vector<2x128xf32>
    %cst_20 = arith.constant dense<0.000000e+00> : vector<2x128xf32>
    %85 = tpu.matmul %65, %0, %cst_20 {dimension_numbers = #tpu.dot_dimension_numbers<[1], [0], [0], [1], [0, 0, 1, 1], [], []>} : vector<2x32xf32>, vector<32x128xf32>, vector<2x128xf32> -> vector<2x128xf32>
    %86 = arith.addf %84, %85 : vector<2x128xf32>
    %87 = arith.negf %86 : vector<2x128xf32>
    %88 = math.exp %87 : vector<2x128xf32>
    %cst_21 = arith.constant 1.000000e+00 : f32
    %89 = vector.broadcast %cst_21 : f32 to vector<2x128xf32>
    %90 = arith.addf %89, %88 : vector<2x128xf32>
    %91 = arith.divf %89, %90 : vector<2x128xf32>
    %92 = vector.extract_strided_slice %91 {offsets = [0, 0], sizes = [2, 32], strides = [1, 1]} : vector<2x128xf32> to vector<2x32xf32>
    %93 = vector.extract_strided_slice %91 {offsets = [0, 32], sizes = [2, 32], strides = [1, 1]} : vector<2x128xf32> to vector<2x32xf32>
    %94 = vector.extract_strided_slice %91 {offsets = [0, 64], sizes = [2, 32], strides = [1, 1]} : vector<2x128xf32> to vector<2x32xf32>
    %95 = vector.extract_strided_slice %86 {offsets = [0, 96], sizes = [2, 32], strides = [1, 1]} : vector<2x128xf32> to vector<2x32xf32>
    %96 = math.tanh %95 : vector<2x32xf32>
    %97 = arith.mulf %93, %63 : vector<2x32xf32>
    %98 = arith.mulf %92, %96 : vector<2x32xf32>
    %99 = arith.addf %97, %98 : vector<2x32xf32>
    %100 = math.tanh %99 : vector<2x32xf32>
    %101 = arith.mulf %94, %100 : vector<2x32xf32>
    %102 = tpu.concatenate %101, %83 in 1 : vector<2x32xf32>, vector<2x32xf32> -> vector<2x64xf32>
    %cst_22 = arith.constant dense<0.000000e+00> : vector<2x128xf32>
    %103 = tpu.matmul %102, %1, %cst_22 {dimension_numbers = #tpu.dot_dimension_numbers<[1], [0], [0], [1], [0, 0, 1, 1], [], []>} : vector<2x64xf32>, vector<64x128xf32>, vector<2x128xf32> -> vector<2x128xf32>
    %104 = arith.addf %103, %10 : vector<2x128xf32>
    %105 = arith.negf %104 : vector<2x128xf32>
    %106 = math.exp %105 : vector<2x128xf32>
    %cst_23 = arith.constant 1.000000e+00 : f32
    %107 = vector.broadcast %cst_23 : f32 to vector<2x128xf32>
    %108 = arith.addf %107, %106 : vector<2x128xf32>
    %109 = arith.divf %107, %108 : vector<2x128xf32>
    %110 = vector.extract_strided_slice %109 {offsets = [0, 0], sizes = [2, 32], strides = [1, 1]} : vector<2x128xf32> to vector<2x32xf32>
    %111 = vector.extract_strided_slice %109 {offsets = [0, 32], sizes = [2, 32], strides = [1, 1]} : vector<2x128xf32> to vector<2x32xf32>
    %112 = vector.extract_strided_slice %109 {offsets = [0, 64], sizes = [2, 32], strides = [1, 1]} : vector<2x128xf32> to vector<2x32xf32>
    %113 = vector.extract_strided_slice %104 {offsets = [0, 96], sizes = [2, 32], strides = [1, 1]} : vector<2x128xf32> to vector<2x32xf32>
    %114 = math.tanh %113 : vector<2x32xf32>
    %115 = arith.mulf %111, %81 : vector<2x32xf32>
    %116 = arith.mulf %110, %114 : vector<2x32xf32>
    %117 = arith.addf %115, %116 : vector<2x32xf32>
    %118 = math.tanh %117 : vector<2x32xf32>
    %119 = arith.mulf %112, %118 : vector<2x32xf32>
    %120 = vector.extract_strided_slice %7 {offsets = [6, 0], sizes = [2, 128], strides = [1, 1]} : vector<16x128xf32> to vector<2x128xf32>
    %cst_24 = arith.constant dense<0.000000e+00> : vector<2x128xf32>
    %121 = tpu.matmul %101, %0, %cst_24 {dimension_numbers = #tpu.dot_dimension_numbers<[1], [0], [0], [1], [0, 0, 1, 1], [], []>} : vector<2x32xf32>, vector<32x128xf32>, vector<2x128xf32> -> vector<2x128xf32>
    %122 = arith.addf %120, %121 : vector<2x128xf32>
    %123 = arith.negf %122 : vector<2x128xf32>
    %124 = math.exp %123 : vector<2x128xf32>
    %cst_25 = arith.constant 1.000000e+00 : f32
    %125 = vector.broadcast %cst_25 : f32 to vector<2x128xf32>
    %126 = arith.addf %125, %124 : vector<2x128xf32>
    %127 = arith.divf %125, %126 : vector<2x128xf32>
    %128 = vector.extract_strided_slice %127 {offsets = [0, 0], sizes = [2, 32], strides = [1, 1]} : vector<2x128xf32> to vector<2x32xf32>
    %129 = vector.extract_strided_slice %127 {offsets = [0, 32], sizes = [2, 32], strides = [1, 1]} : vector<2x128xf32> to vector<2x32xf32>
    %130 = vector.extract_strided_slice %127 {offsets = [0, 64], sizes = [2, 32], strides = [1, 1]} : vector<2x128xf32> to vector<2x32xf32>
    %131 = vector.extract_strided_slice %122 {offsets = [0, 96], sizes = [2, 32], strides = [1, 1]} : vector<2x128xf32> to vector<2x32xf32>
    %132 = math.tanh %131 : vector<2x32xf32>
    %133 = arith.mulf %129, %99 : vector<2x32xf32>
    %134 = arith.mulf %128, %132 : vector<2x32xf32>
    %135 = arith.addf %133, %134 : vector<2x32xf32>
    %136 = math.tanh %135 : vector<2x32xf32>
    %137 = arith.mulf %130, %136 : vector<2x32xf32>
    %138 = tpu.concatenate %137, %119 in 1 : vector<2x32xf32>, vector<2x32xf32> -> vector<2x64xf32>
    %cst_26 = arith.constant dense<0.000000e+00> : vector<2x128xf32>
    %139 = tpu.matmul %138, %1, %cst_26 {dimension_numbers = #tpu.dot_dimension_numbers<[1], [0], [0], [1], [0, 0, 1, 1], [], []>} : vector<2x64xf32>, vector<64x128xf32>, vector<2x128xf32> -> vector<2x128xf32>
    %140 = arith.addf %139, %10 : vector<2x128xf32>
    %141 = arith.negf %140 : vector<2x128xf32>
    %142 = math.exp %141 : vector<2x128xf32>
    %cst_27 = arith.constant 1.000000e+00 : f32
    %143 = vector.broadcast %cst_27 : f32 to vector<2x128xf32>
    %144 = arith.addf %143, %142 : vector<2x128xf32>
    %145 = arith.divf %143, %144 : vector<2x128xf32>
    %146 = vector.extract_strided_slice %145 {offsets = [0, 0], sizes = [2, 32], strides = [1, 1]} : vector<2x128xf32> to vector<2x32xf32>
    %147 = vector.extract_strided_slice %145 {offsets = [0, 32], sizes = [2, 32], strides = [1, 1]} : vector<2x128xf32> to vector<2x32xf32>
    %148 = vector.extract_strided_slice %145 {offsets = [0, 64], sizes = [2, 32], strides = [1, 1]} : vector<2x128xf32> to vector<2x32xf32>
    %149 = vector.extract_strided_slice %140 {offsets = [0, 96], sizes = [2, 32], strides = [1, 1]} : vector<2x128xf32> to vector<2x32xf32>
    %150 = math.tanh %149 : vector<2x32xf32>
    %151 = arith.mulf %147, %117 : vector<2x32xf32>
    %152 = arith.mulf %146, %150 : vector<2x32xf32>
    %153 = arith.addf %151, %152 : vector<2x32xf32>
    %154 = math.tanh %153 : vector<2x32xf32>
    %155 = arith.mulf %148, %154 : vector<2x32xf32>
    %156 = vector.extract_strided_slice %7 {offsets = [8, 0], sizes = [2, 128], strides = [1, 1]} : vector<16x128xf32> to vector<2x128xf32>
    %cst_28 = arith.constant dense<0.000000e+00> : vector<2x128xf32>
    %157 = tpu.matmul %137, %0, %cst_28 {dimension_numbers = #tpu.dot_dimension_numbers<[1], [0], [0], [1], [0, 0, 1, 1], [], []>} : vector<2x32xf32>, vector<32x128xf32>, vector<2x128xf32> -> vector<2x128xf32>
    %158 = arith.addf %156, %157 : vector<2x128xf32>
    %159 = arith.negf %158 : vector<2x128xf32>
    %160 = math.exp %159 : vector<2x128xf32>
    %cst_29 = arith.constant 1.000000e+00 : f32
    %161 = vector.broadcast %cst_29 : f32 to vector<2x128xf32>
    %162 = arith.addf %161, %160 : vector<2x128xf32>
    %163 = arith.divf %161, %162 : vector<2x128xf32>
    %164 = vector.extract_strided_slice %163 {offsets = [0, 0], sizes = [2, 32], strides = [1, 1]} : vector<2x128xf32> to vector<2x32xf32>
    %165 = vector.extract_strided_slice %163 {offsets = [0, 32], sizes = [2, 32], strides = [1, 1]} : vector<2x128xf32> to vector<2x32xf32>
    %166 = vector.extract_strided_slice %163 {offsets = [0, 64], sizes = [2, 32], strides = [1, 1]} : vector<2x128xf32> to vector<2x32xf32>
    %167 = vector.extract_strided_slice %158 {offsets = [0, 96], sizes = [2, 32], strides = [1, 1]} : vector<2x128xf32> to vector<2x32xf32>
    %168 = math.tanh %167 : vector<2x32xf32>
    %169 = arith.mulf %165, %135 : vector<2x32xf32>
    %170 = arith.mulf %164, %168 : vector<2x32xf32>
    %171 = arith.addf %169, %170 : vector<2x32xf32>
    %172 = math.tanh %171 : vector<2x32xf32>
    %173 = arith.mulf %166, %172 : vector<2x32xf32>
    %174 = tpu.concatenate %173, %155 in 1 : vector<2x32xf32>, vector<2x32xf32> -> vector<2x64xf32>
    %cst_30 = arith.constant dense<0.000000e+00> : vector<2x128xf32>
    %175 = tpu.matmul %174, %1, %cst_30 {dimension_numbers = #tpu.dot_dimension_numbers<[1], [0], [0], [1], [0, 0, 1, 1], [], []>} : vector<2x64xf32>, vector<64x128xf32>, vector<2x128xf32> -> vector<2x128xf32>
    %176 = arith.addf %175, %10 : vector<2x128xf32>
    %177 = arith.negf %176 : vector<2x128xf32>
    %178 = math.exp %177 : vector<2x128xf32>
    %cst_31 = arith.constant 1.000000e+00 : f32
    %179 = vector.broadcast %cst_31 : f32 to vector<2x128xf32>
    %180 = arith.addf %179, %178 : vector<2x128xf32>
    %181 = arith.divf %179, %180 : vector<2x128xf32>
    %182 = vector.extract_strided_slice %181 {offsets = [0, 0], sizes = [2, 32], strides = [1, 1]} : vector<2x128xf32> to vector<2x32xf32>
    %183 = vector.extract_strided_slice %181 {offsets = [0, 32], sizes = [2, 32], strides = [1, 1]} : vector<2x128xf32> to vector<2x32xf32>
    %184 = vector.extract_strided_slice %181 {offsets = [0, 64], sizes = [2, 32], strides = [1, 1]} : vector<2x128xf32> to vector<2x32xf32>
    %185 = vector.extract_strided_slice %176 {offsets = [0, 96], sizes = [2, 32], strides = [1, 1]} : vector<2x128xf32> to vector<2x32xf32>
    %186 = math.tanh %185 : vector<2x32xf32>
    %187 = arith.mulf %183, %153 : vector<2x32xf32>
    %188 = arith.mulf %182, %186 : vector<2x32xf32>
    %189 = arith.addf %187, %188 : vector<2x32xf32>
    %190 = math.tanh %189 : vector<2x32xf32>
    %191 = arith.mulf %184, %190 : vector<2x32xf32>
    %192 = vector.extract_strided_slice %7 {offsets = [10, 0], sizes = [2, 128], strides = [1, 1]} : vector<16x128xf32> to vector<2x128xf32>
    %cst_32 = arith.constant dense<0.000000e+00> : vector<2x128xf32>
    %193 = tpu.matmul %173, %0, %cst_32 {dimension_numbers = #tpu.dot_dimension_numbers<[1], [0], [0], [1], [0, 0, 1, 1], [], []>} : vector<2x32xf32>, vector<32x128xf32>, vector<2x128xf32> -> vector<2x128xf32>
    %194 = arith.addf %192, %193 : vector<2x128xf32>
    %195 = arith.negf %194 : vector<2x128xf32>
    %196 = math.exp %195 : vector<2x128xf32>
    %cst_33 = arith.constant 1.000000e+00 : f32
    %197 = vector.broadcast %cst_33 : f32 to vector<2x128xf32>
    %198 = arith.addf %197, %196 : vector<2x128xf32>
    %199 = arith.divf %197, %198 : vector<2x128xf32>
    %200 = vector.extract_strided_slice %199 {offsets = [0, 0], sizes = [2, 32], strides = [1, 1]} : vector<2x128xf32> to vector<2x32xf32>
    %201 = vector.extract_strided_slice %199 {offsets = [0, 32], sizes = [2, 32], strides = [1, 1]} : vector<2x128xf32> to vector<2x32xf32>
    %202 = vector.extract_strided_slice %199 {offsets = [0, 64], sizes = [2, 32], strides = [1, 1]} : vector<2x128xf32> to vector<2x32xf32>
    %203 = vector.extract_strided_slice %194 {offsets = [0, 96], sizes = [2, 32], strides = [1, 1]} : vector<2x128xf32> to vector<2x32xf32>
    %204 = math.tanh %203 : vector<2x32xf32>
    %205 = arith.mulf %201, %171 : vector<2x32xf32>
    %206 = arith.mulf %200, %204 : vector<2x32xf32>
    %207 = arith.addf %205, %206 : vector<2x32xf32>
    %208 = math.tanh %207 : vector<2x32xf32>
    %209 = arith.mulf %202, %208 : vector<2x32xf32>
    %210 = tpu.concatenate %209, %191 in 1 : vector<2x32xf32>, vector<2x32xf32> -> vector<2x64xf32>
    %cst_34 = arith.constant dense<0.000000e+00> : vector<2x128xf32>
    %211 = tpu.matmul %210, %1, %cst_34 {dimension_numbers = #tpu.dot_dimension_numbers<[1], [0], [0], [1], [0, 0, 1, 1], [], []>} : vector<2x64xf32>, vector<64x128xf32>, vector<2x128xf32> -> vector<2x128xf32>
    %212 = arith.addf %211, %10 : vector<2x128xf32>
    %213 = arith.negf %212 : vector<2x128xf32>
    %214 = math.exp %213 : vector<2x128xf32>
    %cst_35 = arith.constant 1.000000e+00 : f32
    %215 = vector.broadcast %cst_35 : f32 to vector<2x128xf32>
    %216 = arith.addf %215, %214 : vector<2x128xf32>
    %217 = arith.divf %215, %216 : vector<2x128xf32>
    %218 = vector.extract_strided_slice %217 {offsets = [0, 0], sizes = [2, 32], strides = [1, 1]} : vector<2x128xf32> to vector<2x32xf32>
    %219 = vector.extract_strided_slice %217 {offsets = [0, 32], sizes = [2, 32], strides = [1, 1]} : vector<2x128xf32> to vector<2x32xf32>
    %220 = vector.extract_strided_slice %217 {offsets = [0, 64], sizes = [2, 32], strides = [1, 1]} : vector<2x128xf32> to vector<2x32xf32>
    %221 = vector.extract_strided_slice %212 {offsets = [0, 96], sizes = [2, 32], strides = [1, 1]} : vector<2x128xf32> to vector<2x32xf32>
    %222 = math.tanh %221 : vector<2x32xf32>
    %223 = arith.mulf %219, %189 : vector<2x32xf32>
    %224 = arith.mulf %218, %222 : vector<2x32xf32>
    %225 = arith.addf %223, %224 : vector<2x32xf32>
    %226 = math.tanh %225 : vector<2x32xf32>
    %227 = arith.mulf %220, %226 : vector<2x32xf32>
    %228 = vector.extract_strided_slice %7 {offsets = [12, 0], sizes = [2, 128], strides = [1, 1]} : vector<16x128xf32> to vector<2x128xf32>
    %cst_36 = arith.constant dense<0.000000e+00> : vector<2x128xf32>
    %229 = tpu.matmul %209, %0, %cst_36 {dimension_numbers = #tpu.dot_dimension_numbers<[1], [0], [0], [1], [0, 0, 1, 1], [], []>} : vector<2x32xf32>, vector<32x128xf32>, vector<2x128xf32> -> vector<2x128xf32>
    %230 = arith.addf %228, %229 : vector<2x128xf32>
    %231 = arith.negf %230 : vector<2x128xf32>
    %232 = math.exp %231 : vector<2x128xf32>
    %cst_37 = arith.constant 1.000000e+00 : f32
    %233 = vector.broadcast %cst_37 : f32 to vector<2x128xf32>
    %234 = arith.addf %233, %232 : vector<2x128xf32>
    %235 = arith.divf %233, %234 : vector<2x128xf32>
    %236 = vector.extract_strided_slice %235 {offsets = [0, 0], sizes = [2, 32], strides = [1, 1]} : vector<2x128xf32> to vector<2x32xf32>
    %237 = vector.extract_strided_slice %235 {offsets = [0, 32], sizes = [2, 32], strides = [1, 1]} : vector<2x128xf32> to vector<2x32xf32>
    %238 = vector.extract_strided_slice %235 {offsets = [0, 64], sizes = [2, 32], strides = [1, 1]} : vector<2x128xf32> to vector<2x32xf32>
    %239 = vector.extract_strided_slice %230 {offsets = [0, 96], sizes = [2, 32], strides = [1, 1]} : vector<2x128xf32> to vector<2x32xf32>
    %240 = math.tanh %239 : vector<2x32xf32>
    %241 = arith.mulf %237, %207 : vector<2x32xf32>
    %242 = arith.mulf %236, %240 : vector<2x32xf32>
    %243 = arith.addf %241, %242 : vector<2x32xf32>
    %244 = math.tanh %243 : vector<2x32xf32>
    %245 = arith.mulf %238, %244 : vector<2x32xf32>
    %246 = tpu.concatenate %245, %227 in 1 : vector<2x32xf32>, vector<2x32xf32> -> vector<2x64xf32>
    %cst_38 = arith.constant dense<0.000000e+00> : vector<2x128xf32>
    %247 = tpu.matmul %246, %1, %cst_38 {dimension_numbers = #tpu.dot_dimension_numbers<[1], [0], [0], [1], [0, 0, 1, 1], [], []>} : vector<2x64xf32>, vector<64x128xf32>, vector<2x128xf32> -> vector<2x128xf32>
    %248 = arith.addf %247, %10 : vector<2x128xf32>
    %249 = arith.negf %248 : vector<2x128xf32>
    %250 = math.exp %249 : vector<2x128xf32>
    %cst_39 = arith.constant 1.000000e+00 : f32
    %251 = vector.broadcast %cst_39 : f32 to vector<2x128xf32>
    %252 = arith.addf %251, %250 : vector<2x128xf32>
    %253 = arith.divf %251, %252 : vector<2x128xf32>
    %254 = vector.extract_strided_slice %253 {offsets = [0, 0], sizes = [2, 32], strides = [1, 1]} : vector<2x128xf32> to vector<2x32xf32>
    %255 = vector.extract_strided_slice %253 {offsets = [0, 32], sizes = [2, 32], strides = [1, 1]} : vector<2x128xf32> to vector<2x32xf32>
    %256 = vector.extract_strided_slice %253 {offsets = [0, 64], sizes = [2, 32], strides = [1, 1]} : vector<2x128xf32> to vector<2x32xf32>
    %257 = vector.extract_strided_slice %248 {offsets = [0, 96], sizes = [2, 32], strides = [1, 1]} : vector<2x128xf32> to vector<2x32xf32>
    %258 = math.tanh %257 : vector<2x32xf32>
    %259 = arith.mulf %255, %225 : vector<2x32xf32>
    %260 = arith.mulf %254, %258 : vector<2x32xf32>
    %261 = arith.addf %259, %260 : vector<2x32xf32>
    %262 = math.tanh %261 : vector<2x32xf32>
    %263 = arith.mulf %256, %262 : vector<2x32xf32>
    %264 = vector.extract_strided_slice %7 {offsets = [14, 0], sizes = [2, 128], strides = [1, 1]} : vector<16x128xf32> to vector<2x128xf32>
    %cst_40 = arith.constant dense<0.000000e+00> : vector<2x128xf32>
    %265 = tpu.matmul %245, %0, %cst_40 {dimension_numbers = #tpu.dot_dimension_numbers<[1], [0], [0], [1], [0, 0, 1, 1], [], []>} : vector<2x32xf32>, vector<32x128xf32>, vector<2x128xf32> -> vector<2x128xf32>
    %266 = arith.addf %264, %265 : vector<2x128xf32>
    %267 = arith.negf %266 : vector<2x128xf32>
    %268 = math.exp %267 : vector<2x128xf32>
    %cst_41 = arith.constant 1.000000e+00 : f32
    %269 = vector.broadcast %cst_41 : f32 to vector<2x128xf32>
    %270 = arith.addf %269, %268 : vector<2x128xf32>
    %271 = arith.divf %269, %270 : vector<2x128xf32>
    %272 = vector.extract_strided_slice %271 {offsets = [0, 0], sizes = [2, 32], strides = [1, 1]} : vector<2x128xf32> to vector<2x32xf32>
    %273 = vector.extract_strided_slice %271 {offsets = [0, 32], sizes = [2, 32], strides = [1, 1]} : vector<2x128xf32> to vector<2x32xf32>
    %274 = vector.extract_strided_slice %271 {offsets = [0, 64], sizes = [2, 32], strides = [1, 1]} : vector<2x128xf32> to vector<2x32xf32>
    %275 = vector.extract_strided_slice %266 {offsets = [0, 96], sizes = [2, 32], strides = [1, 1]} : vector<2x128xf32> to vector<2x32xf32>
    %276 = math.tanh %275 : vector<2x32xf32>
    %277 = arith.mulf %273, %243 : vector<2x32xf32>
    %278 = arith.mulf %272, %276 : vector<2x32xf32>
    %279 = arith.addf %277, %278 : vector<2x32xf32>
    %280 = math.tanh %279 : vector<2x32xf32>
    %281 = arith.mulf %274, %280 : vector<2x32xf32>
    %282 = tpu.concatenate %281, %263 in 1 : vector<2x32xf32>, vector<2x32xf32> -> vector<2x64xf32>
    %cst_42 = arith.constant dense<0.000000e+00> : vector<2x128xf32>
    %283 = tpu.matmul %282, %1, %cst_42 {dimension_numbers = #tpu.dot_dimension_numbers<[1], [0], [0], [1], [0, 0, 1, 1], [], []>} : vector<2x64xf32>, vector<64x128xf32>, vector<2x128xf32> -> vector<2x128xf32>
    %284 = arith.addf %283, %10 : vector<2x128xf32>
    %285 = arith.negf %284 : vector<2x128xf32>
    %286 = math.exp %285 : vector<2x128xf32>
    %cst_43 = arith.constant 1.000000e+00 : f32
    %287 = vector.broadcast %cst_43 : f32 to vector<2x128xf32>
    %288 = arith.addf %287, %286 : vector<2x128xf32>
    %289 = arith.divf %287, %288 : vector<2x128xf32>
    %290 = vector.extract_strided_slice %289 {offsets = [0, 0], sizes = [2, 32], strides = [1, 1]} : vector<2x128xf32> to vector<2x32xf32>
    %291 = vector.extract_strided_slice %289 {offsets = [0, 32], sizes = [2, 32], strides = [1, 1]} : vector<2x128xf32> to vector<2x32xf32>
    %292 = vector.extract_strided_slice %289 {offsets = [0, 64], sizes = [2, 32], strides = [1, 1]} : vector<2x128xf32> to vector<2x32xf32>
    %293 = vector.extract_strided_slice %284 {offsets = [0, 96], sizes = [2, 32], strides = [1, 1]} : vector<2x128xf32> to vector<2x32xf32>
    %294 = math.tanh %293 : vector<2x32xf32>
    %295 = arith.mulf %291, %261 : vector<2x32xf32>
    %296 = arith.mulf %290, %294 : vector<2x32xf32>
    %297 = arith.addf %295, %296 : vector<2x32xf32>
    %298 = math.tanh %297 : vector<2x32xf32>
    %299 = arith.mulf %292, %298 : vector<2x32xf32>
    %c0_44 = arith.constant 0 : index
    %c0_45 = arith.constant 0 : index
    %300 = vector.load %arg6[%c0_44, %c0_45] : memref<32x16xf32, #tpu.memory_space<vmem>>, vector<32x16xf32>
    %cst_46 = arith.constant dense<0.000000e+00> : vector<2x16xf32>
    %301 = tpu.matmul %299, %300, %cst_46 {dimension_numbers = #tpu.dot_dimension_numbers<[1], [0], [0], [1], [0, 0, 1, 1], [], []>} : vector<2x32xf32>, vector<32x16xf32>, vector<2x16xf32> -> vector<2x16xf32>
    %c0_47 = arith.constant 0 : index
    %c0_48 = arith.constant 0 : index
    %302 = vector.load %arg7[%c0_47, %c0_48] : memref<1x16xf32, #tpu.memory_space<vmem>>, vector<1x16xf32>
    %303 = vector.broadcast %302 : vector<1x16xf32> to vector<2x16xf32>
    %304 = arith.addf %301, %303 : vector<2x16xf32>
    %cst_49 = arith.constant 0.000000e+00 : f32
    %305 = vector.broadcast %cst_49 : f32 to vector<2x16xf32>
    %306 = arith.maximumf %304, %305 : vector<2x16xf32>
    %c0_50 = arith.constant 0 : index
    %c0_51 = arith.constant 0 : index
    %307 = vector.load %arg8[%c0_50, %c0_51] : memref<16x1xf32, #tpu.memory_space<vmem>>, vector<16x1xf32>
    %cst_52 = arith.constant dense<0.000000e+00> : vector<2x1xf32>
    %308 = tpu.matmul %306, %307, %cst_52 {dimension_numbers = #tpu.dot_dimension_numbers<[1], [0], [0], [1], [0, 0, 1, 1], [], []>} : vector<2x16xf32>, vector<16x1xf32>, vector<2x1xf32> -> vector<2x1xf32>
    %c0_53 = arith.constant 0 : index
    %c0_54 = arith.constant 0 : index
    %309 = vector.load %arg9[%c0_53, %c0_54] : memref<1x1xf32, #tpu.memory_space<vmem>>, vector<1x1xf32>
    %310 = vector.broadcast %309 : vector<1x1xf32> to vector<2x1xf32>
    %311 = arith.addf %308, %310 : vector<2x1xf32>
    %c0_55 = arith.constant 0 : index
    %c0_56 = arith.constant 0 : index
    %312 = vector.load %arg10[%c0_55, %c0_56] : memref<2x1xf32, #tpu.memory_space<vmem>>, vector<2x1xf32>
    tpu.vector_store %arg10[%c0_55, %c0_56], %311 {strides = array<i32>} : memref<2x1xf32, #tpu.memory_space<vmem>>, vector<2x1xf32>,
    return
  }
}

</mosaic_0001>

<llo_original>
// kernel: tpu_custom_call.1
$region0: #{tpu_custom_call.1}
  #allocation0 [shape = 'u32[]', space=smem, size = 0x4, offset = 0x4, fixed_abs, tag = 'smem constant byte address 0x4 - core index']
  #allocation1 [shape = 'u32[144,128]{1,0:T(1,128)}', space=vmem, size = 0x12000, scoped, tag = 'internal scratch']
  #allocation2 [shape = 'f32[1,1]{1,0:T(1,128)S(1)}', space=vmem, size = 0x200, scoped, tag = 'scoped memory for tpu_custom_call.1']
  %s0 = inlined_call_operand.vmem [shape: f32[16,4], index: 0, kind: input, shape index: {}]
  %s1 = inlined_call_operand.vmem [shape: f32[4,128], index: 1, kind: input, shape index: {}]
  %s2 = inlined_call_operand.hbm [shape: f32[32,128], index: 2, kind: input, shape index: {}]
  %s3 = inlined_call_operand.vmem [shape: f32[1,128], index: 3, kind: input, shape index: {}]
  %s4 = inlined_call_operand.vmem [shape: f32[64,128], index: 4, kind: input, shape index: {}]
  %s5 = inlined_call_operand.vmem [shape: f32[1,128], index: 5, kind: input, shape index: {}]
  %s6 = inlined_call_operand.vmem [shape: f32[32,16], index: 6, kind: input, shape index: {}]
  %s7 = inlined_call_operand.vmem [shape: f32[1,16], index: 7, kind: input, shape index: {}]
  %s8 = inlined_call_operand.vmem [shape: f32[16,1], index: 8, kind: input, shape index: {}]
  %s9 = inlined_call_operand.<no memory space> [shape: f32[1,1], index: 9, kind: input, shape index: {}]
  %s10 = inlined_call_operand.vmem [shape: f32[2,1], index: 10, kind: output, shape index: {}]
  %s11 = sld [smem:[#allocation0]]
  $region54: #{tpu_custom_call.1} parent=0
    _
  %s13 = ssub.s32 1, %s11
  %s14 = scalar_select 0, %s13, %s11
  %v15 = vstv %s9
  %16 = vst [vmem:[#allocation2] sm:$0x1] %v15
  $region1: #{tpu_custom_call.1} parent=0
    #allocation3 [shape = 'u8[16384]{0}', space=vmem, size = 0x4000, scoped, tag = 'input window, operand 2, single buffered']
    #allocation4 [shape = 's32[1]{0}', space=sflag, size = 0x4, scoped, tag = 'scoped memory for tpu_custom_call.1']
    %17 = vsyncpa [#allocation4], 0
    // Predicated region
    $region2: #{tpu_custom_call.1} parent=1 // pred_check
      _
    $region3: #{tpu_custom_call.1} parent=1 // pred_check_branch
      %19 = sbr.rel (0) target = $region5
    $region4: #{tpu_custom_call.1} parent=1 // pred_region
      _
    $region5: #{tpu_custom_call.1} parent=1 // pred_fallthru
      _
    // Predicated region
    $region6: #{tpu_custom_call.1} parent=1 // pred_check
      _
    $region7: #{tpu_custom_call.1} parent=1 // pred_check_branch
      %21 = sbr.rel (0) target = $region9
    $region8: #{tpu_custom_call.1} parent=1 // pred_region
      _
    $region9: #{tpu_custom_call.1} parent=1 // pred_fallthru
      _
    // Predicated region
    $region10: #{tpu_custom_call.1} parent=1 // pred_check
      _
    $region11: #{tpu_custom_call.1} parent=1 // pred_check_branch
      %23 = sbr.rel (0) target = $region13
    $region12: #{tpu_custom_call.1} parent=1 // pred_region
      %s25 = ssub.s32 512, 512
      %26 = vsyncadd [#allocation4], %s25
      %s27 = sshll.u32 [#allocation3], 4
      %s28 = int_to_ptr.vmem [resolvable:$true] %s27
      %33 = dma.hbm_to_vmem [thread:$0]  %s2, 512, %s28, [#allocation4], 128, 128, 8
    $region13: #{tpu_custom_call.1} parent=1 // pred_fallthru
      _
    // Predicated region
    $region14: #{tpu_custom_call.1} parent=1 // pred_check
      _
    $region15: #{tpu_custom_call.1} parent=1 // pred_check_branch
      %35 = sbr.rel (0) target = $region17
    $region16: #{tpu_custom_call.1} parent=1 // pred_region
      _
    $region17: #{tpu_custom_call.1} parent=1 // pred_fallthru
      _
    // Predicated region
    $region18: #{tpu_custom_call.1} parent=1 // pred_check
      _
    $region19: #{tpu_custom_call.1} parent=1 // pred_check_branch
      %37 = sbr.rel (0) target = $region21
    $region20: #{tpu_custom_call.1} parent=1 // pred_region
      _
    $region21: #{tpu_custom_call.1} parent=1 // pred_fallthru
      _
    // Predicated region
    $region22: #{tpu_custom_call.1} parent=1 // pred_check
      _
    $region23: #{tpu_custom_call.1} parent=1 // pred_check_branch
      %39 = sbr.rel (0) target = $region25
    $region24: #{tpu_custom_call.1} parent=1 // pred_region
      _
    $region25: #{tpu_custom_call.1} parent=1 // pred_fallthru
      _
    // Predicated region
    $region26: #{tpu_custom_call.1} parent=1 // pred_check
      _
    $region27: #{tpu_custom_call.1} parent=1 // pred_check_branch
      %41 = sbr.rel (0) target = $region29
    $region28: #{tpu_custom_call.1} parent=1 // pred_region
      _
    $region29: #{tpu_custom_call.1} parent=1 // pred_fallthru
      _
    // Predicated region
    $region30: #{tpu_custom_call.1} parent=1 // pred_check
      _
    $region31: #{tpu_custom_call.1} parent=1 // pred_check_branch
      %43 = sbr.rel (0) target = $region33
    $region32: #{tpu_custom_call.1} parent=1 // pred_region
      _
    $region33: #{tpu_custom_call.1} parent=1 // pred_fallthru
      _
    // Predicated region
    $region34: #{tpu_custom_call.1} parent=1 // pred_check
      _
    $region35: #{tpu_custom_call.1} parent=1 // pred_check_branch
      %45 = sbr.rel (0) target = $region37
    $region36: #{tpu_custom_call.1} parent=1 // pred_region
      _
    $region37: #{tpu_custom_call.1} parent=1 // pred_fallthru
      _
    // Predicated region
    $region38: #{tpu_custom_call.1} parent=1 // pred_check
      _
    $region39: #{tpu_custom_call.1} parent=1 // pred_check_branch
      %47 = sbr.rel (0) target = $region41
    $region40: #{tpu_custom_call.1} parent=1 // pred_region
      _
    $region41: #{tpu_custom_call.1} parent=1 // pred_fallthru
      _
    // Predicated region
    $region42: #{tpu_custom_call.1} parent=1 // pred_check
      _
    $region43: #{tpu_custom_call.1} parent=1 // pred_check_branch
      %49 = sbr.rel (0) target = $region45
    $region44: #{tpu_custom_call.1} parent=1 // pred_region
      %50 = dma.done [#allocation4], 512
    $region45: #{tpu_custom_call.1} parent=1 // pred_fallthru
      _
    %v51 = vld [vmem:[#allocation3] sm:$0xff]
    %v52 = vld [vmem:[#allocation3 + $0x8] sm:$0xff]
    %v53 = vld [vmem:[#allocation3 + $0x10] sm:$0xff]
    %v54 = vld [vmem:[#allocation3 + $0x18] sm:$0xff]
    %v55 = vld [vmem:[%s4] sm:$0xff]
    %v56 = vld [vmem:[%s4 + $0x8] sm:$0xff]
    %v57 = vld [vmem:[%s4 + $0x10] sm:$0xff]
    %v58 = vld [vmem:[%s4 + $0x18] sm:$0xff]
    %v59 = vld [vmem:[%s4 + $0x20] sm:$0xff]
    %v60 = vld [vmem:[%s4 + $0x28] sm:$0xff]
    %v61 = vld [vmem:[%s4 + $0x30] sm:$0xff]
    %v62 = vld [vmem:[%s4 + $0x38] sm:$0xff]
    %v63 = vld [vmem:[%s0] sm:$0xff]
    %v64 = vld [vmem:[%s0 + $0x8] sm:$0xff]
    %v65 = vld [vmem:[%s1] sm:$0xf]
    %v66 = vld [vmem:[%s3] sm:$0x1]
    %v68 = vlaneseq
    %v69 = vshrl.u32 %v68, 7
    %v70 = vsub.s32 0, %v69
    %v71 = vrot.slane %v66, %v70
    %vm73 = vcmask 31744
    %v75 = vsel %vm73, %v63, 0
    %v78 = vsel %vm73, %v64, 0
    %vm80 = vcmask 1043456
    %v82 = vsel %vm80, %v65, 0
    %84 = vmatprep.subr.mxu0 0.0
    %85 = vmatpush1.msra.mxu0 0.0
    %86 = vmatprep.subr.mxu0 0.0
    %87 = vmatpush1.msra.mxu0 0.0
    %88 = vmatprep.subr.mxu0 0.0
    %89 = vmatpush1.msra.mxu0 0.0
    %90 = vmatprep.subr.mxu0 0.0
    %91 = vmatpush1.msra.mxu0 0.0
    %92 = vmatprep.subr.mxu0 0.0
    %93 = vmatpush1.msra.mxu0 0.0
    %94 = vmatprep.subr.mxu0 0.0
    %95 = vmatpush1.msra.mxu0 0.0
    %96 = vmatprep.subr.mxu0 0.0
    %97 = vmatpush1.msra.mxu0 0.0
    %98 = vmatprep.subr.mxu0 0.0
    %99 = vmatpush1.msra.mxu0 0.0
    %100 = vmatprep.subr.mxu0 0.0
    %101 = vmatpush1.msra.mxu0 0.0
    %102 = vmatprep.subr.mxu0 0.0
    %103 = vmatpush1.msra.mxu0 0.0
    %104 = vmatprep.subr.mxu0 0.0
    %105 = vmatpush1.msra.mxu0 0.0
    %106 = vmatprep.subr.mxu0 0.0
    %107 = vmatpush1.msra.mxu0 0.0
    %108 = vmatprep.subr.mxu0 0.0
    %109 = vmatpush1.msra.mxu0 0.0
    %110 = vmatprep.subr.mxu0 0.0
    %111 = vmatpush1.msra.mxu0 0.0
    %112 = vmatprep.subr.mxu0 0.0
    %113 = vmatpush1.msra.mxu0 0.0
    %114 = vmatprep.subr.mxu0 0.0
    %115 = vmatpush1.msra.mxu0 %v82
    %116 = vmatprep.subr.mxu0 0.0
    %117 = vmatpush2.msra.mxu0 0.0
    %118 = vmatprep.subr.mxu0 0.0
    %119 = vmatpush2.msra.mxu0 0.0
    %120 = vmatprep.subr.mxu0 0.0
    %121 = vmatpush2.msra.mxu0 0.0
    %122 = vmatprep.subr.mxu0 0.0
    %123 = vmatpush2.msra.mxu0 0.0
    %124 = vmatprep.subr.mxu0 0.0
    %125 = vmatpush2.msra.mxu0 0.0
    %126 = vmatprep.subr.mxu0 0.0
    %127 = vmatpush2.msra.mxu0 0.0
    %128 = vmatprep.subr.mxu0 0.0
    %129 = vmatpush2.msra.mxu0 0.0
    %130 = vmatprep.subr.mxu0 0.0
    %131 = vmatpush2.msra.mxu0 0.0
    %132 = vmatprep.subr.mxu0 0.0
    %133 = vmatpush2.msra.mxu0 0.0
    %134 = vmatprep.subr.mxu0 0.0
    %135 = vmatpush2.msra.mxu0 0.0
    %136 = vmatprep.subr.mxu0 0.0
    %137 = vmatpush2.msra.mxu0 0.0
    %138 = vmatprep.subr.mxu0 0.0
    %139 = vmatpush2.msra.mxu0 0.0
    %140 = vmatprep.subr.mxu0 0.0
    %141 = vmatpush2.msra.mxu0 0.0
    %142 = vmatprep.subr.mxu0 0.0
    %143 = vmatpush2.msra.mxu0 0.0
    %144 = vmatprep.subr.mxu0 0.0
    %145 = vmatpush2.msra.mxu0 0.0
    %146 = vmatprep.subr.mxu0 0.0
    %147 = vmatpush2.msra.mxu0 0.0
    %148 = vmatprep.mubr.f32.mxu0 0.0
    %149 = vmatmul.mubr.f32.gmra.mxu0 %v75
    %v150 = vpop.f32.mrf.mxu0
    %v151 = vadd.f32 %v71, %v150
    %v152 = vpop.f32.mrf.mxu0
    %153 = vmatprep.mubr.f32.mxu0 0.0
    %154 = vmatmul.mubr.f32.gmra.mxu0 %v78
    %v155 = vpop.f32.mrf.mxu0
    %v156 = vadd.f32 %v71, %v155
    %v157 = vpop.f32.mrf.mxu0
    %158 = vdwg.mxu0
    %v159 = vld [vmem:[%s5] sm:$0x1]
    %v161 = vlaneseq
    %v162 = vshrl.u32 %v161, 7
    %v163 = vsub.s32 0, %v162
    %v164 = vrot.slane %v159, %v163
    %vm166 = vcmask 261120
    %v168 = vsel %vm166, 0.0, 0
    %170 = vmatprep.subr.mxu0 0.0
    %171 = vmatpush1.msra.mxu0 0.0
    %172 = vmatprep.subr.mxu0 0.0
    %173 = vmatpush1.msra.mxu0 0.0
    %174 = vmatprep.subr.mxu0 0.0
    %175 = vmatpush1.msra.mxu0 0.0
    %176 = vmatprep.subr.mxu0 0.0
    %177 = vmatpush1.msra.mxu0 0.0
    %178 = vmatprep.subr.mxu0 0.0
    %179 = vmatpush1.msra.mxu0 0.0
    %180 = vmatprep.subr.mxu0 0.0
    %181 = vmatpush1.msra.mxu0 0.0
    %182 = vmatprep.subr.mxu0 0.0
    %183 = vmatpush1.msra.mxu0 0.0
    %184 = vmatprep.subr.mxu0 0.0
    %185 = vmatpush1.msra.mxu0 0.0
    %186 = vmatprep.subr.mxu0 0.0
    %187 = vmatpush1.msra.mxu0 0.0
    %188 = vmatprep.subr.mxu0 0.0
    %189 = vmatpush1.msra.mxu0 0.0
    %190 = vmatprep.subr.mxu0 0.0
    %191 = vmatpush1.msra.mxu0 0.0
    %192 = vmatprep.subr.mxu0 0.0
    %193 = vmatpush1.msra.mxu0 0.0
    %194 = vmatprep.subr.mxu0 0.0
    %195 = vmatpush1.msra.mxu0 %v54
    %196 = vmatprep.subr.mxu0 0.0
    %197 = vmatpush1.msra.mxu0 %v53
    %198 = vmatprep.subr.mxu0 0.0
    %199 = vmatpush1.msra.mxu0 %v52
    %200 = vmatprep.subr.mxu0 0.0
    %201 = vmatpush1.msra.mxu0 %v51
    %202 = vmatprep.subr.mxu0 0.0
    %203 = vmatpush2.msra.mxu0 0.0
    %204 = vmatprep.subr.mxu0 0.0
    %205 = vmatpush2.msra.mxu0 0.0
    %206 = vmatprep.subr.mxu0 0.0
    %207 = vmatpush2.msra.mxu0 0.0
    %208 = vmatprep.subr.mxu0 0.0
    %209 = vmatpush2.msra.mxu0 0.0
    %210 = vmatprep.subr.mxu0 0.0
    %211 = vmatpush2.msra.mxu0 0.0
    %212 = vmatprep.subr.mxu0 0.0
    %213 = vmatpush2.msra.mxu0 0.0
    %214 = vmatprep.subr.mxu0 0.0
    %215 = vmatpush2.msra.mxu0 0.0
    %216 = vmatprep.subr.mxu0 0.0
    %217 = vmatpush2.msra.mxu0 0.0
    %218 = vmatprep.subr.mxu0 0.0
    %219 = vmatpush2.msra.mxu0 0.0
    %220 = vmatprep.subr.mxu0 0.0
    %221 = vmatpush2.msra.mxu0 0.0
    %222 = vmatprep.subr.mxu0 0.0
    %223 = vmatpush2.msra.mxu0 0.0
    %224 = vmatprep.subr.mxu0 0.0
    %225 = vmatpush2.msra.mxu0 0.0
    %226 = vmatprep.subr.mxu0 0.0
    %227 = vmatpush2.msra.mxu0 0.0
    %228 = vmatprep.subr.mxu0 0.0
    %229 = vmatpush2.msra.mxu0 0.0
    %230 = vmatprep.subr.mxu0 0.0
    %231 = vmatpush2.msra.mxu0 0.0
    %232 = vmatprep.subr.mxu0 0.0
    %233 = vmatpush2.msra.mxu0 0.0
    %234 = vmatprep.mubr.f32.mxu0 0.0
    %235 = vmatmul.mubr.f32.gmra.mxu0 %v168
    %v236 = vpop.f32.mrf.mxu0
    %v237 = vadd.f32 0.0, %v236
    %v238 = vpop.f32.mrf.mxu0
    %239 = vdwg.mxu0
    %v240 = vadd.f32 %v151, %v237
    %v241 = vxor.u32 %v240, 2147483648
    %v242 = vmul.f32 %v241, 1.442695
    %v243 = vpow.pop %v242
    %v244 = vadd.f32 %v243, 1.0
    %v245 = vrcp.pop %v244
    %v246 = vmul.f32 1.0, %v245
    %v247 = vtanh.pop %v240
    %v248 = vmul.f32 %v246, 0.0
    %250 = vrot.lane.b32.xlu0 %v247, 32
    %v251 = vpop.permute.xlu0 %250
    %v253 = vmul.f32 %v246, %v251
    %255 = vrot.lane.b32.xlu0 %v253, 32
    %v256 = vpop.permute.xlu0 %255
    %v258 = vadd.f32 %v248, %v256
    %v259 = vtanh.pop %v258
    %261 = vrot.lane.b32.xlu0 %v259, 32
    %v262 = vpop.permute.xlu0 %261
    %v264 = vmul.f32 %v246, %v262
    %266 = vrot.lane.b32.xlu0 %v264, 64
    %v267 = vpop.permute.xlu0 %266
    %v269 = vsel %vm166, %v267, 0.0
    %vm270 = vcmask 523264
    %v272 = vsel %vm270, %v269, 0
    %274 = vmatprep.subr.mxu0 0.0
    %275 = vmatpush1.msra.mxu0 0.0
    %276 = vmatprep.subr.mxu0 0.0
    %277 = vmatpush1.msra.mxu0 0.0
    %278 = vmatprep.subr.mxu0 0.0
    %279 = vmatpush1.msra.mxu0 0.0
    %280 = vmatprep.subr.mxu0 0.0
    %281 = vmatpush1.msra.mxu0 0.0
    %282 = vmatprep.subr.mxu0 0.0
    %283 = vmatpush1.msra.mxu0 0.0
    %284 = vmatprep.subr.mxu0 0.0
    %285 = vmatpush1.msra.mxu0 0.0
    %286 = vmatprep.subr.mxu0 0.0
    %287 = vmatpush1.msra.mxu0 0.0
    %288 = vmatprep.subr.mxu0 0.0
    %289 = vmatpush1.msra.mxu0 0.0
    %290 = vmatprep.subr.mxu0 0.0
    %291 = vmatpush1.msra.mxu0 %v62
    %292 = vmatprep.subr.mxu0 0.0
    %293 = vmatpush1.msra.mxu0 %v61
    %294 = vmatprep.subr.mxu0 0.0
    %295 = vmatpush1.msra.mxu0 %v60
    %296 = vmatprep.subr.mxu0 0.0
    %297 = vmatpush1.msra.mxu0 %v59
    %298 = vmatprep.subr.mxu0 0.0
    %299 = vmatpush1.msra.mxu0 %v58
    %300 = vmatprep.subr.mxu0 0.0
    %301 = vmatpush1.msra.mxu0 %v57
    %302 = vmatprep.subr.mxu0 0.0
    %303 = vmatpush1.msra.mxu0 %v56
    %304 = vmatprep.subr.mxu0 0.0
    %305 = vmatpush1.msra.mxu0 %v55
    %306 = vmatprep.subr.mxu0 0.0
    %307 = vmatpush2.msra.mxu0 0.0
    %308 = vmatprep.subr.mxu0 0.0
    %309 = vmatpush2.msra.mxu0 0.0
    %310 = vmatprep.subr.mxu0 0.0
    %311 = vmatpush2.msra.mxu0 0.0
    %312 = vmatprep.subr.mxu0 0.0
    %313 = vmatpush2.msra.mxu0 0.0
    %314 = vmatprep.subr.mxu0 0.0
    %315 = vmatpush2.msra.mxu0 0.0
    %316 = vmatprep.subr.mxu0 0.0
    %317 = vmatpush2.msra.mxu0 0.0
    %318 = vmatprep.subr.mxu0 0.0
    %319 = vmatpush2.msra.mxu0 0.0
    %320 = vmatprep.subr.mxu0 0.0
    %321 = vmatpush2.msra.mxu0 0.0
    %322 = vmatprep.subr.mxu0 0.0
    %323 = vmatpush2.msra.mxu0 0.0
    %324 = vmatprep.subr.mxu0 0.0
    %325 = vmatpush2.msra.mxu0 0.0
    %326 = vmatprep.subr.mxu0 0.0
    %327 = vmatpush2.msra.mxu0 0.0
    %328 = vmatprep.subr.mxu0 0.0
    %329 = vmatpush2.msra.mxu0 0.0
    %330 = vmatprep.subr.mxu0 0.0
    %331 = vmatpush2.msra.mxu0 0.0
    %332 = vmatprep.subr.mxu0 0.0
    %333 = vmatpush2.msra.mxu0 0.0
    %334 = vmatprep.subr.mxu0 0.0
    %335 = vmatpush2.msra.mxu0 0.0
    %336 = vmatprep.subr.mxu0 0.0
    %337 = vmatpush2.msra.mxu0 0.0
    %338 = vmatprep.mubr.f32.mxu0 0.0
    %339 = vmatmul.mubr.f32.gmra.mxu0 %v272
    %v340 = vpop.f32.mrf.mxu0
    %v341 = vadd.f32 %v164, %v340
    %v342 = vpop.f32.mrf.mxu0
    %343 = vdwg.mxu0
    %v344 = vxor.u32 %v341, 2147483648
    %v345 = vmul.f32 %v344, 1.442695
    %v346 = vpow.pop %v345
    %v347 = vadd.f32 %v346, 1.0
    %v348 = vrcp.pop %v347
    %v349 = vmul.f32 1.0, %v348
    %v350 = vtanh.pop %v341
    %v351 = vmul.f32 %v349, 0.0
    %353 = vrot.lane.b32.xlu0 %v350, 32
    %v354 = vpop.permute.xlu0 %353
    %v356 = vmul.f32 %v349, %v354
    %358 = vrot.lane.b32.xlu0 %v356, 32
    %v359 = vpop.permute.xlu0 %358
    %v361 = vadd.f32 %v351, %v359
    %v362 = vtanh.pop %v361
    %364 = vrot.lane.b32.xlu0 %v362, 32
    %v365 = vpop.permute.xlu0 %364
    %v367 = vmul.f32 %v349, %v365
    %v368 = vsel %vm166, %v267, 0
    %370 = vmatprep.subr.mxu0 0.0
    %371 = vmatpush1.msra.mxu0 0.0
    %372 = vmatprep.subr.mxu0 0.0
    %373 = vmatpush1.msra.mxu0 0.0
    %374 = vmatprep.subr.mxu0 0.0
    %375 = vmatpush1.msra.mxu0 0.0
    %376 = vmatprep.subr.mxu0 0.0
    %377 = vmatpush1.msra.mxu0 0.0
    %378 = vmatprep.subr.mxu0 0.0
    %379 = vmatpush1.msra.mxu0 0.0
    %380 = vmatprep.subr.mxu0 0.0
    %381 = vmatpush1.msra.mxu0 0.0
    %382 = vmatprep.subr.mxu0 0.0
    %383 = vmatpush1.msra.mxu0 0.0
    %384 = vmatprep.subr.mxu0 0.0
    %385 = vmatpush1.msra.mxu0 0.0
    %386 = vmatprep.subr.mxu0 0.0
    %387 = vmatpush1.msra.mxu0 0.0
    %388 = vmatprep.subr.mxu0 0.0
    %389 = vmatpush1.msra.mxu0 0.0
    %390 = vmatprep.subr.mxu0 0.0
    %391 = vmatpush1.msra.mxu0 0.0
    %392 = vmatprep.subr.mxu0 0.0
    %393 = vmatpush1.msra.mxu0 0.0
    %394 = vmatprep.subr.mxu0 0.0
    %395 = vmatpush1.msra.mxu0 %v54
    %396 = vmatprep.subr.mxu0 0.0
    %397 = vmatpush1.msra.mxu0 %v53
    %398 = vmatprep.subr.mxu0 0.0
    %399 = vmatpush1.msra.mxu0 %v52
    %400 = vmatprep.subr.mxu0 0.0
    %401 = vmatpush1.msra.mxu0 %v51
    %402 = vmatprep.subr.mxu0 0.0
    %403 = vmatpush2.msra.mxu0 0.0
    %404 = vmatprep.subr.mxu0 0.0
    %405 = vmatpush2.msra.mxu0 0.0
    %406 = vmatprep.subr.mxu0 0.0
    %407 = vmatpush2.msra.mxu0 0.0
    %408 = vmatprep.subr.mxu0 0.0
    %409 = vmatpush2.msra.mxu0 0.0
    %410 = vmatprep.subr.mxu0 0.0
    %411 = vmatpush2.msra.mxu0 0.0
    %412 = vmatprep.subr.mxu0 0.0
    %413 = vmatpush2.msra.mxu0 0.0
    %414 = vmatprep.subr.mxu0 0.0
    %415 = vmatpush2.msra.mxu0 0.0
    %416 = vmatprep.subr.mxu0 0.0
    %417 = vmatpush2.msra.mxu0 0.0
    %418 = vmatprep.subr.mxu0 0.0
    %419 = vmatpush2.msra.mxu0 0.0
    %420 = vmatprep.subr.mxu0 0.0
    %421 = vmatpush2.msra.mxu0 0.0
    %422 = vmatprep.subr.mxu0 0.0
    %423 = vmatpush2.msra.mxu0 0.0
    %424 = vmatprep.subr.mxu0 0.0
    %425 = vmatpush2.msra.mxu0 0.0
    %426 = vmatprep.subr.mxu0 0.0
    %427 = vmatpush2.msra.mxu0 0.0
    %428 = vmatprep.subr.mxu0 0.0
    %429 = vmatpush2.msra.mxu0 0.0
    %430 = vmatprep.subr.mxu0 0.0
    %431 = vmatpush2.msra.mxu0 0.0
    %432 = vmatprep.subr.mxu0 0.0
    %433 = vmatpush2.msra.mxu0 0.0
    %434 = vmatprep.mubr.f32.mxu0 0.0
    %435 = vmatmul.mubr.f32.gmra.mxu0 %v368
    %v436 = vpop.f32.mrf.mxu0
    %v437 = vadd.f32 0.0, %v436
    %v438 = vpop.f32.mrf.mxu0
    %439 = vdwg.mxu0
    %v441 = vrot.slane %v437, 6
    %v443 = vadd.f32 %v151, %v441
    %v444 = vxor.u32 %v443, 2147483648
    %v445 = vmul.f32 %v444, 1.442695
    %v446 = vpow.pop %v445
    %v447 = vadd.f32 %v446, 1.0
    %v448 = vrcp.pop %v447
    %v449 = vmul.f32 1.0, %v448
    %v450 = vtanh.pop %v443
    %v452 = vrot.slane %v258, 6
    %v454 = vmul.f32 %v449, %v452
    %456 = vrot.lane.b32.xlu0 %v450, 32
    %v457 = vpop.permute.xlu0 %456
    %v459 = vmul.f32 %v449, %v457
    %461 = vrot.lane.b32.xlu0 %v459, 32
    %v462 = vpop.permute.xlu0 %461
    %v464 = vadd.f32 %v454, %v462
    %v465 = vtanh.pop %v464
    %467 = vrot.lane.b32.xlu0 %v465, 32
    %v468 = vpop.permute.xlu0 %467
    %v470 = vmul.f32 %v449, %v468
    %472 = vrot.lane.b32.xlu0 %v470, 64
    %v473 = vpop.permute.xlu0 %472
    %v476 = vrot.slane %v367, 6
    %477 = vrot.lane.b32.xlu0 %v476, 96
    %v478 = vpop.permute.xlu0 %477
    %v480 = vsel %vm166, %v473, %v478
    %v482 = vrot.slane %v480, 2
    %v483 = vsel %vm270, %v482, 0
    %485 = vmatprep.subr.mxu0 0.0
    %486 = vmatpush1.msra.mxu0 0.0
    %487 = vmatprep.subr.mxu0 0.0
    %488 = vmatpush1.msra.mxu0 0.0
    %489 = vmatprep.subr.mxu0 0.0
    %490 = vmatpush1.msra.mxu0 0.0
    %491 = vmatprep.subr.mxu0 0.0
    %492 = vmatpush1.msra.mxu0 0.0
    %493 = vmatprep.subr.mxu0 0.0
    %494 = vmatpush1.msra.mxu0 0.0
    %495 = vmatprep.subr.mxu0 0.0
    %496 = vmatpush1.msra.mxu0 0.0
    %497 = vmatprep.subr.mxu0 0.0
    %498 = vmatpush1.msra.mxu0 0.0
    %499 = vmatprep.subr.mxu0 0.0
    %500 = vmatpush1.msra.mxu0 0.0
    %501 = vmatprep.subr.mxu0 0.0
    %502 = vmatpush1.msra.mxu0 %v62
    %503 = vmatprep.subr.mxu0 0.0
    %504 = vmatpush1.msra.mxu0 %v61
    %505 = vmatprep.subr.mxu0 0.0
    %506 = vmatpush1.msra.mxu0 %v60
    %507 = vmatprep.subr.mxu0 0.0
    %508 = vmatpush1.msra.mxu0 %v59
    %509 = vmatprep.subr.mxu0 0.0
    %510 = vmatpush1.msra.mxu0 %v58
    %511 = vmatprep.subr.mxu0 0.0
    %512 = vmatpush1.msra.mxu0 %v57
    %513 = vmatprep.subr.mxu0 0.0
    %514 = vmatpush1.msra.mxu0 %v56
    %515 = vmatprep.subr.mxu0 0.0
    %516 = vmatpush1.msra.mxu0 %v55
    %517 = vmatprep.subr.mxu0 0.0
    %518 = vmatpush2.msra.mxu0 0.0
    %519 = vmatprep.subr.mxu0 0.0
    %520 = vmatpush2.msra.mxu0 0.0
    %521 = vmatprep.subr.mxu0 0.0
    %522 = vmatpush2.msra.mxu0 0.0
    %523 = vmatprep.subr.mxu0 0.0
    %524 = vmatpush2.msra.mxu0 0.0
    %525 = vmatprep.subr.mxu0 0.0
    %526 = vmatpush2.msra.mxu0 0.0
    %527 = vmatprep.subr.mxu0 0.0
    %528 = vmatpush2.msra.mxu0 0.0
    %529 = vmatprep.subr.mxu0 0.0
    %530 = vmatpush2.msra.mxu0 0.0
    %531 = vmatprep.subr.mxu0 0.0
    %532 = vmatpush2.msra.mxu0 0.0
    %533 = vmatprep.subr.mxu0 0.0
    %534 = vmatpush2.msra.mxu0 0.0
    %535 = vmatprep.subr.mxu0 0.0
    %536 = vmatpush2.msra.mxu0 0.0
    %537 = vmatprep.subr.mxu0 0.0
    %538 = vmatpush2.msra.mxu0 0.0
    %539 = vmatprep.subr.mxu0 0.0
    %540 = vmatpush2.msra.mxu0 0.0
    %541 = vmatprep.subr.mxu0 0.0
    %542 = vmatpush2.msra.mxu0 0.0
    %543 = vmatprep.subr.mxu0 0.0
    %544 = vmatpush2.msra.mxu0 0.0
    %545 = vmatprep.subr.mxu0 0.0
    %546 = vmatpush2.msra.mxu0 0.0
    %547 = vmatprep.subr.mxu0 0.0
    %548 = vmatpush2.msra.mxu0 0.0
    %549 = vmatprep.mubr.f32.mxu0 0.0
    %550 = vmatmul.mubr.f32.gmra.mxu0 %v483
    %v551 = vpop.f32.mrf.mxu0
    %v552 = vadd.f32 %v164, %v551
    %v553 = vpop.f32.mrf.mxu0
    %554 = vdwg.mxu0
    %v555 = vxor.u32 %v552, 2147483648
    %v556 = vmul.f32 %v555, 1.442695
    %v557 = vpow.pop %v556
    %v558 = vadd.f32 %v557, 1.0
    %v559 = vrcp.pop %v558
    %v560 = vmul.f32 1.0, %v559
    %v561 = vtanh.pop %v552
    %v562 = vmul.f32 %v560, %v361
    %564 = vrot.lane.b32.xlu0 %v561, 32
    %v565 = vpop.permute.xlu0 %564
    %v567 = vmul.f32 %v560, %v565
    %569 = vrot.lane.b32.xlu0 %v567, 32
    %v570 = vpop.permute.xlu0 %569
    %v572 = vadd.f32 %v562, %v570
    %v573 = vtanh.pop %v572
    %575 = vrot.lane.b32.xlu0 %v573, 32
    %v576 = vpop.permute.xlu0 %575
    %v578 = vmul.f32 %v560, %v576
    %v579 = vrot.slane %v470, 2
    %580 = vrot.lane.b32.xlu0 %v579, 64
    %v581 = vpop.permute.xlu0 %580
    %v582 = vsel %vm166, %v581, 0
    %584 = vmatprep.subr.mxu0 0.0
    %585 = vmatpush1.msra.mxu0 0.0
    %586 = vmatprep.subr.mxu0 0.0
    %587 = vmatpush1.msra.mxu0 0.0
    %588 = vmatprep.subr.mxu0 0.0
    %589 = vmatpush1.msra.mxu0 0.0
    %590 = vmatprep.subr.mxu0 0.0
    %591 = vmatpush1.msra.mxu0 0.0
    %592 = vmatprep.subr.mxu0 0.0
    %593 = vmatpush1.msra.mxu0 0.0
    %594 = vmatprep.subr.mxu0 0.0
    %595 = vmatpush1.msra.mxu0 0.0
    %596 = vmatprep.subr.mxu0 0.0
    %597 = vmatpush1.msra.mxu0 0.0
    %598 = vmatprep.subr.mxu0 0.0
    %599 = vmatpush1.msra.mxu0 0.0
    %600 = vmatprep.subr.mxu0 0.0
    %601 = vmatpush1.msra.mxu0 0.0
    %602 = vmatprep.subr.mxu0 0.0
    %603 = vmatpush1.msra.mxu0 0.0
    %604 = vmatprep.subr.mxu0 0.0
    %605 = vmatpush1.msra.mxu0 0.0
    %606 = vmatprep.subr.mxu0 0.0
    %607 = vmatpush1.msra.mxu0 0.0
    %608 = vmatprep.subr.mxu0 0.0
    %609 = vmatpush1.msra.mxu0 %v54
    %610 = vmatprep.subr.mxu0 0.0
    %611 = vmatpush1.msra.mxu0 %v53
    %612 = vmatprep.subr.mxu0 0.0
    %613 = vmatpush1.msra.mxu0 %v52
    %614 = vmatprep.subr.mxu0 0.0
    %615 = vmatpush1.msra.mxu0 %v51
    %616 = vmatprep.subr.mxu0 0.0
    %617 = vmatpush2.msra.mxu0 0.0
    %618 = vmatprep.subr.mxu0 0.0
    %619 = vmatpush2.msra.mxu0 0.0
    %620 = vmatprep.subr.mxu0 0.0
    %621 = vmatpush2.msra.mxu0 0.0
    %622 = vmatprep.subr.mxu0 0.0
    %623 = vmatpush2.msra.mxu0 0.0
    %624 = vmatprep.subr.mxu0 0.0
    %625 = vmatpush2.msra.mxu0 0.0
    %626 = vmatprep.subr.mxu0 0.0
    %627 = vmatpush2.msra.mxu0 0.0
    %628 = vmatprep.subr.mxu0 0.0
    %629 = vmatpush2.msra.mxu0 0.0
    %630 = vmatprep.subr.mxu0 0.0
    %631 = vmatpush2.msra.mxu0 0.0
    %632 = vmatprep.subr.mxu0 0.0
    %633 = vmatpush2.msra.mxu0 0.0
    %634 = vmatprep.subr.mxu0 0.0
    %635 = vmatpush2.msra.mxu0 0.0
    %636 = vmatprep.subr.mxu0 0.0
    %637 = vmatpush2.msra.mxu0 0.0
    %638 = vmatprep.subr.mxu0 0.0
    %639 = vmatpush2.msra.mxu0 0.0
    %640 = vmatprep.subr.mxu0 0.0
    %641 = vmatpush2.msra.mxu0 0.0
    %642 = vmatprep.subr.mxu0 0.0
    %643 = vmatpush2.msra.mxu0 0.0
    %644 = vmatprep.subr.mxu0 0.0
    %645 = vmatpush2.msra.mxu0 0.0
    %646 = vmatprep.subr.mxu0 0.0
    %647 = vmatpush2.msra.mxu0 0.0
    %648 = vmatprep.mubr.f32.mxu0 0.0
    %649 = vmatmul.mubr.f32.gmra.mxu0 %v582
    %v650 = vpop.f32.mrf.mxu0
    %v651 = vadd.f32 0.0, %v650
    %v652 = vpop.f32.mrf.mxu0
    %653 = vdwg.mxu0
    %v655 = vrot.slane %v651, 4
    %v657 = vadd.f32 %v151, %v655
    %v658 = vxor.u32 %v657, 2147483648
    %v659 = vmul.f32 %v658, 1.442695
    %v660 = vpow.pop %v659
    %v661 = vadd.f32 %v660, 1.0
    %v662 = vrcp.pop %v661
    %v663 = vmul.f32 1.0, %v662
    %v664 = vtanh.pop %v657
    %v666 = vrot.slane %v464, 6
    %v668 = vmul.f32 %v663, %v666
    %670 = vrot.lane.b32.xlu0 %v664, 32
    %v671 = vpop.permute.xlu0 %670
    %v673 = vmul.f32 %v663, %v671
    %675 = vrot.lane.b32.xlu0 %v673, 32
    %v676 = vpop.permute.xlu0 %675
    %v678 = vadd.f32 %v668, %v676
    %v679 = vtanh.pop %v678
    %681 = vrot.lane.b32.xlu0 %v679, 32
    %v682 = vpop.permute.xlu0 %681
    %v684 = vmul.f32 %v663, %v682
    %686 = vrot.lane.b32.xlu0 %v684, 64
    %v687 = vpop.permute.xlu0 %686
    %v690 = vrot.slane %v578, 4
    %691 = vrot.lane.b32.xlu0 %v690, 96
    %v692 = vpop.permute.xlu0 %691
    %v694 = vsel %vm166, %v687, %v692
    %v696 = vrot.slane %v694, 4
    %v697 = vsel %vm270, %v696, 0
    %699 = vmatprep.subr.mxu0 0.0
    %700 = vmatpush1.msra.mxu0 0.0
    %701 = vmatprep.subr.mxu0 0.0
    %702 = vmatpush1.msra.mxu0 0.0
    %703 = vmatprep.subr.mxu0 0.0
    %704 = vmatpush1.msra.mxu0 0.0
    %705 = vmatprep.subr.mxu0 0.0
    %706 = vmatpush1.msra.mxu0 0.0
    %707 = vmatprep.subr.mxu0 0.0
    %708 = vmatpush1.msra.mxu0 0.0
    %709 = vmatprep.subr.mxu0 0.0
    %710 = vmatpush1.msra.mxu0 0.0
    %711 = vmatprep.subr.mxu0 0.0
    %712 = vmatpush1.msra.mxu0 0.0
    %713 = vmatprep.subr.mxu0 0.0
    %714 = vmatpush1.msra.mxu0 0.0
    %715 = vmatprep.subr.mxu0 0.0
    %716 = vmatpush1.msra.mxu0 %v62
    %717 = vmatprep.subr.mxu0 0.0
    %718 = vmatpush1.msra.mxu0 %v61
    %719 = vmatprep.subr.mxu0 0.0
    %720 = vmatpush1.msra.mxu0 %v60
    %721 = vmatprep.subr.mxu0 0.0
    %722 = vmatpush1.msra.mxu0 %v59
    %723 = vmatprep.subr.mxu0 0.0
    %724 = vmatpush1.msra.mxu0 %v58
    %725 = vmatprep.subr.mxu0 0.0
    %726 = vmatpush1.msra.mxu0 %v57
    %727 = vmatprep.subr.mxu0 0.0
    %728 = vmatpush1.msra.mxu0 %v56
    %729 = vmatprep.subr.mxu0 0.0
    %730 = vmatpush1.msra.mxu0 %v55
    %731 = vmatprep.subr.mxu0 0.0
    %732 = vmatpush2.msra.mxu0 0.0
    %733 = vmatprep.subr.mxu0 0.0
    %734 = vmatpush2.msra.mxu0 0.0
    %735 = vmatprep.subr.mxu0 0.0
    %736 = vmatpush2.msra.mxu0 0.0
    %737 = vmatprep.subr.mxu0 0.0
    %738 = vmatpush2.msra.mxu0 0.0
    %739 = vmatprep.subr.mxu0 0.0
    %740 = vmatpush2.msra.mxu0 0.0
    %741 = vmatprep.subr.mxu0 0.0
    %742 = vmatpush2.msra.mxu0 0.0
    %743 = vmatprep.subr.mxu0 0.0
    %744 = vmatpush2.msra.mxu0 0.0
    %745 = vmatprep.subr.mxu0 0.0
    %746 = vmatpush2.msra.mxu0 0.0
    %747 = vmatprep.subr.mxu0 0.0
    %748 = vmatpush2.msra.mxu0 0.0
    %749 = vmatprep.subr.mxu0 0.0
    %750 = vmatpush2.msra.mxu0 0.0
    %751 = vmatprep.subr.mxu0 0.0
    %752 = vmatpush2.msra.mxu0 0.0
    %753 = vmatprep.subr.mxu0 0.0
    %754 = vmatpush2.msra.mxu0 0.0
    %755 = vmatprep.subr.mxu0 0.0
    %756 = vmatpush2.msra.mxu0 0.0
    %757 = vmatprep.subr.mxu0 0.0
    %758 = vmatpush2.msra.mxu0 0.0
    %759 = vmatprep.subr.mxu0 0.0
    %760 = vmatpush2.msra.mxu0 0.0
    %761 = vmatprep.subr.mxu0 0.0
    %762 = vmatpush2.msra.mxu0 0.0
    %763 = vmatprep.mubr.f32.mxu0 0.0
    %764 = vmatmul.mubr.f32.gmra.mxu0 %v697
    %v765 = vpop.f32.mrf.mxu0
    %v766 = vadd.f32 %v164, %v765
    %v767 = vpop.f32.mrf.mxu0
    %768 = vdwg.mxu0
    %v769 = vxor.u32 %v766, 2147483648
    %v770 = vmul.f32 %v769, 1.442695
    %v771 = vpow.pop %v770
    %v772 = vadd.f32 %v771, 1.0
    %v773 = vrcp.pop %v772
    %v774 = vmul.f32 1.0, %v773
    %v775 = vtanh.pop %v766
    %v776 = vmul.f32 %v774, %v572
    %778 = vrot.lane.b32.xlu0 %v775, 32
    %v779 = vpop.permute.xlu0 %778
    %v781 = vmul.f32 %v774, %v779
    %783 = vrot.lane.b32.xlu0 %v781, 32
    %v784 = vpop.permute.xlu0 %783
    %v786 = vadd.f32 %v776, %v784
    %v787 = vtanh.pop %v786
    %789 = vrot.lane.b32.xlu0 %v787, 32
    %v790 = vpop.permute.xlu0 %789
    %v792 = vmul.f32 %v774, %v790
    %v793 = vrot.slane %v684, 4
    %794 = vrot.lane.b32.xlu0 %v793, 64
    %v795 = vpop.permute.xlu0 %794
    %v796 = vsel %vm166, %v795, 0
    %798 = vmatprep.subr.mxu0 0.0
    %799 = vmatpush1.msra.mxu0 0.0
    %800 = vmatprep.subr.mxu0 0.0
    %801 = vmatpush1.msra.mxu0 0.0
    %802 = vmatprep.subr.mxu0 0.0
    %803 = vmatpush1.msra.mxu0 0.0
    %804 = vmatprep.subr.mxu0 0.0
    %805 = vmatpush1.msra.mxu0 0.0
    %806 = vmatprep.subr.mxu0 0.0
    %807 = vmatpush1.msra.mxu0 0.0
    %808 = vmatprep.subr.mxu0 0.0
    %809 = vmatpush1.msra.mxu0 0.0
    %810 = vmatprep.subr.mxu0 0.0
    %811 = vmatpush1.msra.mxu0 0.0
    %812 = vmatprep.subr.mxu0 0.0
    %813 = vmatpush1.msra.mxu0 0.0
    %814 = vmatprep.subr.mxu0 0.0
    %815 = vmatpush1.msra.mxu0 0.0
    %816 = vmatprep.subr.mxu0 0.0
    %817 = vmatpush1.msra.mxu0 0.0
    %818 = vmatprep.subr.mxu0 0.0
    %819 = vmatpush1.msra.mxu0 0.0
    %820 = vmatprep.subr.mxu0 0.0
    %821 = vmatpush1.msra.mxu0 0.0
    %822 = vmatprep.subr.mxu0 0.0
    %823 = vmatpush1.msra.mxu0 %v54
    %824 = vmatprep.subr.mxu0 0.0
    %825 = vmatpush1.msra.mxu0 %v53
    %826 = vmatprep.subr.mxu0 0.0
    %827 = vmatpush1.msra.mxu0 %v52
    %828 = vmatprep.subr.mxu0 0.0
    %829 = vmatpush1.msra.mxu0 %v51
    %830 = vmatprep.subr.mxu0 0.0
    %831 = vmatpush2.msra.mxu0 0.0
    %832 = vmatprep.subr.mxu0 0.0
    %833 = vmatpush2.msra.mxu0 0.0
    %834 = vmatprep.subr.mxu0 0.0
    %835 = vmatpush2.msra.mxu0 0.0
    %836 = vmatprep.subr.mxu0 0.0
    %837 = vmatpush2.msra.mxu0 0.0
    %838 = vmatprep.subr.mxu0 0.0
    %839 = vmatpush2.msra.mxu0 0.0
    %840 = vmatprep.subr.mxu0 0.0
    %841 = vmatpush2.msra.mxu0 0.0
    %842 = vmatprep.subr.mxu0 0.0
    %843 = vmatpush2.msra.mxu0 0.0
    %844 = vmatprep.subr.mxu0 0.0
    %845 = vmatpush2.msra.mxu0 0.0
    %846 = vmatprep.subr.mxu0 0.0
    %847 = vmatpush2.msra.mxu0 0.0
    %848 = vmatprep.subr.mxu0 0.0
    %849 = vmatpush2.msra.mxu0 0.0
    %850 = vmatprep.subr.mxu0 0.0
    %851 = vmatpush2.msra.mxu0 0.0
    %852 = vmatprep.subr.mxu0 0.0
    %853 = vmatpush2.msra.mxu0 0.0
    %854 = vmatprep.subr.mxu0 0.0
    %855 = vmatpush2.msra.mxu0 0.0
    %856 = vmatprep.subr.mxu0 0.0
    %857 = vmatpush2.msra.mxu0 0.0
    %858 = vmatprep.subr.mxu0 0.0
    %859 = vmatpush2.msra.mxu0 0.0
    %860 = vmatprep.subr.mxu0 0.0
    %861 = vmatpush2.msra.mxu0 0.0
    %862 = vmatprep.mubr.f32.mxu0 0.0
    %863 = vmatmul.mubr.f32.gmra.mxu0 %v796
    %v864 = vpop.f32.mrf.mxu0
    %v865 = vadd.f32 0.0, %v864
    %v866 = vpop.f32.mrf.mxu0
    %867 = vdwg.mxu0
    %v869 = vrot.slane %v865, 2
    %v871 = vadd.f32 %v151, %v869
    %v872 = vxor.u32 %v871, 2147483648
    %v873 = vmul.f32 %v872, 1.442695
    %v874 = vpow.pop %v873
    %v875 = vadd.f32 %v874, 1.0
    %v876 = vrcp.pop %v875
    %v877 = vmul.f32 1.0, %v876
    %v878 = vtanh.pop %v871
    %v880 = vrot.slane %v678, 6
    %v882 = vmul.f32 %v877, %v880
    %884 = vrot.lane.b32.xlu0 %v878, 32
    %v885 = vpop.permute.xlu0 %884
    %v887 = vmul.f32 %v877, %v885
    %889 = vrot.lane.b32.xlu0 %v887, 32
    %v890 = vpop.permute.xlu0 %889
    %v892 = vadd.f32 %v882, %v890
    %v893 = vtanh.pop %v892
    %895 = vrot.lane.b32.xlu0 %v893, 32
    %v896 = vpop.permute.xlu0 %895
    %v898 = vmul.f32 %v877, %v896
    %900 = vrot.lane.b32.xlu0 %v898, 64
    %v901 = vpop.permute.xlu0 %900
    %v904 = vrot.slane %v792, 2
    %905 = vrot.lane.b32.xlu0 %v904, 96
    %v906 = vpop.permute.xlu0 %905
    %v908 = vsel %vm166, %v901, %v906
    %v910 = vrot.slane %v908, 6
    %v911 = vsel %vm270, %v910, 0
    %913 = vmatprep.subr.mxu0 0.0
    %914 = vmatpush1.msra.mxu0 0.0
    %915 = vmatprep.subr.mxu0 0.0
    %916 = vmatpush1.msra.mxu0 0.0
    %917 = vmatprep.subr.mxu0 0.0
    %918 = vmatpush1.msra.mxu0 0.0
    %919 = vmatprep.subr.mxu0 0.0
    %920 = vmatpush1.msra.mxu0 0.0
    %921 = vmatprep.subr.mxu0 0.0
    %922 = vmatpush1.msra.mxu0 0.0
    %923 = vmatprep.subr.mxu0 0.0
    %924 = vmatpush1.msra.mxu0 0.0
    %925 = vmatprep.subr.mxu0 0.0
    %926 = vmatpush1.msra.mxu0 0.0
    %927 = vmatprep.subr.mxu0 0.0
    %928 = vmatpush1.msra.mxu0 0.0
    %929 = vmatprep.subr.mxu0 0.0
    %930 = vmatpush1.msra.mxu0 %v62
    %931 = vmatprep.subr.mxu0 0.0
    %932 = vmatpush1.msra.mxu0 %v61
    %933 = vmatprep.subr.mxu0 0.0
    %934 = vmatpush1.msra.mxu0 %v60
    %935 = vmatprep.subr.mxu0 0.0
    %936 = vmatpush1.msra.mxu0 %v59
    %937 = vmatprep.subr.mxu0 0.0
    %938 = vmatpush1.msra.mxu0 %v58
    %939 = vmatprep.subr.mxu0 0.0
    %940 = vmatpush1.msra.mxu0 %v57
    %941 = vmatprep.subr.mxu0 0.0
    %942 = vmatpush1.msra.mxu0 %v56
    %943 = vmatprep.subr.mxu0 0.0
    %944 = vmatpush1.msra.mxu0 %v55
    %945 = vmatprep.subr.mxu0 0.0
    %946 = vmatpush2.msra.mxu0 0.0
    %947 = vmatprep.subr.mxu0 0.0
    %948 = vmatpush2.msra.mxu0 0.0
    %949 = vmatprep.subr.mxu0 0.0
    %950 = vmatpush2.msra.mxu0 0.0
    %951 = vmatprep.subr.mxu0 0.0
    %952 = vmatpush2.msra.mxu0 0.0
    %953 = vmatprep.subr.mxu0 0.0
    %954 = vmatpush2.msra.mxu0 0.0
    %955 = vmatprep.subr.mxu0 0.0
    %956 = vmatpush2.msra.mxu0 0.0
    %957 = vmatprep.subr.mxu0 0.0
    %958 = vmatpush2.msra.mxu0 0.0
    %959 = vmatprep.subr.mxu0 0.0
    %960 = vmatpush2.msra.mxu0 0.0
    %961 = vmatprep.subr.mxu0 0.0
    %962 = vmatpush2.msra.mxu0 0.0
    %963 = vmatprep.subr.mxu0 0.0
    %964 = vmatpush2.msra.mxu0 0.0
    %965 = vmatprep.subr.mxu0 0.0
    %966 = vmatpush2.msra.mxu0 0.0
    %967 = vmatprep.subr.mxu0 0.0
    %968 = vmatpush2.msra.mxu0 0.0
    %969 = vmatprep.subr.mxu0 0.0
    %970 = vmatpush2.msra.mxu0 0.0
    %971 = vmatprep.subr.mxu0 0.0
    %972 = vmatpush2.msra.mxu0 0.0
    %973 = vmatprep.subr.mxu0 0.0
    %974 = vmatpush2.msra.mxu0 0.0
    %975 = vmatprep.subr.mxu0 0.0
    %976 = vmatpush2.msra.mxu0 0.0
    %977 = vmatprep.mubr.f32.mxu0 0.0
    %978 = vmatmul.mubr.f32.gmra.mxu0 %v911
    %v979 = vpop.f32.mrf.mxu0
    %v980 = vadd.f32 %v164, %v979
    %v981 = vpop.f32.mrf.mxu0
    %982 = vdwg.mxu0
    %v983 = vxor.u32 %v980, 2147483648
    %v984 = vmul.f32 %v983, 1.442695
    %v985 = vpow.pop %v984
    %v986 = vadd.f32 %v985, 1.0
    %v987 = vrcp.pop %v986
    %v988 = vmul.f32 1.0, %v987
    %v989 = vtanh.pop %v980
    %v990 = vmul.f32 %v988, %v786
    %992 = vrot.lane.b32.xlu0 %v989, 32
    %v993 = vpop.permute.xlu0 %992
    %v995 = vmul.f32 %v988, %v993
    %997 = vrot.lane.b32.xlu0 %v995, 32
    %v998 = vpop.permute.xlu0 %997
    %v1000 = vadd.f32 %v990, %v998
    %v1001 = vtanh.pop %v1000
    %1003 = vrot.lane.b32.xlu0 %v1001, 32
    %v1004 = vpop.permute.xlu0 %1003
    %v1006 = vmul.f32 %v988, %v1004
    %v1007 = vrot.slane %v898, 6
    %1008 = vrot.lane.b32.xlu0 %v1007, 64
    %v1009 = vpop.permute.xlu0 %1008
    %v1010 = vsel %vm166, %v1009, 0
    %1012 = vmatprep.subr.mxu0 0.0
    %1013 = vmatpush1.msra.mxu0 0.0
    %1014 = vmatprep.subr.mxu0 0.0
    %1015 = vmatpush1.msra.mxu0 0.0
    %1016 = vmatprep.subr.mxu0 0.0
    %1017 = vmatpush1.msra.mxu0 0.0
    %1018 = vmatprep.subr.mxu0 0.0
    %1019 = vmatpush1.msra.mxu0 0.0
    %1020 = vmatprep.subr.mxu0 0.0
    %1021 = vmatpush1.msra.mxu0 0.0
    %1022 = vmatprep.subr.mxu0 0.0
    %1023 = vmatpush1.msra.mxu0 0.0
    %1024 = vmatprep.subr.mxu0 0.0
    %1025 = vmatpush1.msra.mxu0 0.0
    %1026 = vmatprep.subr.mxu0 0.0
    %1027 = vmatpush1.msra.mxu0 0.0
    %1028 = vmatprep.subr.mxu0 0.0
    %1029 = vmatpush1.msra.mxu0 0.0
    %1030 = vmatprep.subr.mxu0 0.0
    %1031 = vmatpush1.msra.mxu0 0.0
    %1032 = vmatprep.subr.mxu0 0.0
    %1033 = vmatpush1.msra.mxu0 0.0
    %1034 = vmatprep.subr.mxu0 0.0
    %1035 = vmatpush1.msra.mxu0 0.0
    %1036 = vmatprep.subr.mxu0 0.0
    %1037 = vmatpush1.msra.mxu0 %v54
    %1038 = vmatprep.subr.mxu0 0.0
    %1039 = vmatpush1.msra.mxu0 %v53
    %1040 = vmatprep.subr.mxu0 0.0
    %1041 = vmatpush1.msra.mxu0 %v52
    %1042 = vmatprep.subr.mxu0 0.0
    %1043 = vmatpush1.msra.mxu0 %v51
    %1044 = vmatprep.subr.mxu0 0.0
    %1045 = vmatpush2.msra.mxu0 0.0
    %1046 = vmatprep.subr.mxu0 0.0
    %1047 = vmatpush2.msra.mxu0 0.0
    %1048 = vmatprep.subr.mxu0 0.0
    %1049 = vmatpush2.msra.mxu0 0.0
    %1050 = vmatprep.subr.mxu0 0.0
    %1051 = vmatpush2.msra.mxu0 0.0
    %1052 = vmatprep.subr.mxu0 0.0
    %1053 = vmatpush2.msra.mxu0 0.0
    %1054 = vmatprep.subr.mxu0 0.0
    %1055 = vmatpush2.msra.mxu0 0.0
    %1056 = vmatprep.subr.mxu0 0.0
    %1057 = vmatpush2.msra.mxu0 0.0
    %1058 = vmatprep.subr.mxu0 0.0
    %1059 = vmatpush2.msra.mxu0 0.0
    %1060 = vmatprep.subr.mxu0 0.0
    %1061 = vmatpush2.msra.mxu0 0.0
    %1062 = vmatprep.subr.mxu0 0.0
    %1063 = vmatpush2.msra.mxu0 0.0
    %1064 = vmatprep.subr.mxu0 0.0
    %1065 = vmatpush2.msra.mxu0 0.0
    %1066 = vmatprep.subr.mxu0 0.0
    %1067 = vmatpush2.msra.mxu0 0.0
    %1068 = vmatprep.subr.mxu0 0.0
    %1069 = vmatpush2.msra.mxu0 0.0
    %1070 = vmatprep.subr.mxu0 0.0
    %1071 = vmatpush2.msra.mxu0 0.0
    %1072 = vmatprep.subr.mxu0 0.0
    %1073 = vmatpush2.msra.mxu0 0.0
    %1074 = vmatprep.subr.mxu0 0.0
    %1075 = vmatpush2.msra.mxu0 0.0
    %1076 = vmatprep.mubr.f32.mxu0 0.0
    %1077 = vmatmul.mubr.f32.gmra.mxu0 %v1010
    %v1078 = vpop.f32.mrf.mxu0
    %v1079 = vadd.f32 0.0, %v1078
    %v1080 = vpop.f32.mrf.mxu0
    %1081 = vdwg.mxu0
    %v1082 = vadd.f32 %v156, %v1079
    %v1083 = vxor.u32 %v1082, 2147483648
    %v1084 = vmul.f32 %v1083, 1.442695
    %v1085 = vpow.pop %v1084
    %v1086 = vadd.f32 %v1085, 1.0
    %v1087 = vrcp.pop %v1086
    %v1088 = vmul.f32 1.0, %v1087
    %v1089 = vtanh.pop %v1082
    %v1091 = vrot.slane %v892, 6
    %v1093 = vmul.f32 %v1088, %v1091
    %1095 = vrot.lane.b32.xlu0 %v1089, 32
    %v1096 = vpop.permute.xlu0 %1095
    %v1098 = vmul.f32 %v1088, %v1096
    %1100 = vrot.lane.b32.xlu0 %v1098, 32
    %v1101 = vpop.permute.xlu0 %1100
    %v1103 = vadd.f32 %v1093, %v1101
    %v1104 = vtanh.pop %v1103
    %1106 = vrot.lane.b32.xlu0 %v1104, 32
    %v1107 = vpop.permute.xlu0 %1106
    %v1109 = vmul.f32 %v1088, %v1107
    %1111 = vrot.lane.b32.xlu0 %v1109, 64
    %v1112 = vpop.permute.xlu0 %1111
    %1115 = vrot.lane.b32.xlu0 %v1006, 96
    %v1116 = vpop.permute.xlu0 %1115
    %v1118 = vsel %vm166, %v1112, %v1116
    %v1120 = vsel %vm270, %v1118, 0
    %1122 = vmatprep.subr.mxu0 0.0
    %1123 = vmatpush1.msra.mxu0 0.0
    %1124 = vmatprep.subr.mxu0 0.0
    %1125 = vmatpush1.msra.mxu0 0.0
    %1126 = vmatprep.subr.mxu0 0.0
    %1127 = vmatpush1.msra.mxu0 0.0
    %1128 = vmatprep.subr.mxu0 0.0
    %1129 = vmatpush1.msra.mxu0 0.0
    %1130 = vmatprep.subr.mxu0 0.0
    %1131 = vmatpush1.msra.mxu0 0.0
    %1132 = vmatprep.subr.mxu0 0.0
    %1133 = vmatpush1.msra.mxu0 0.0
    %1134 = vmatprep.subr.mxu0 0.0
    %1135 = vmatpush1.msra.mxu0 0.0
    %1136 = vmatprep.subr.mxu0 0.0
    %1137 = vmatpush1.msra.mxu0 0.0
    %1138 = vmatprep.subr.mxu0 0.0
    %1139 = vmatpush1.msra.mxu0 %v62
    %1140 = vmatprep.subr.mxu0 0.0
    %1141 = vmatpush1.msra.mxu0 %v61
    %1142 = vmatprep.subr.mxu0 0.0
    %1143 = vmatpush1.msra.mxu0 %v60
    %1144 = vmatprep.subr.mxu0 0.0
    %1145 = vmatpush1.msra.mxu0 %v59
    %1146 = vmatprep.subr.mxu0 0.0
    %1147 = vmatpush1.msra.mxu0 %v58
    %1148 = vmatprep.subr.mxu0 0.0
    %1149 = vmatpush1.msra.mxu0 %v57
    %1150 = vmatprep.subr.mxu0 0.0
    %1151 = vmatpush1.msra.mxu0 %v56
    %1152 = vmatprep.subr.mxu0 0.0
    %1153 = vmatpush1.msra.mxu0 %v55
    %1154 = vmatprep.subr.mxu0 0.0
    %1155 = vmatpush2.msra.mxu0 0.0
    %1156 = vmatprep.subr.mxu0 0.0
    %1157 = vmatpush2.msra.mxu0 0.0
    %1158 = vmatprep.subr.mxu0 0.0
    %1159 = vmatpush2.msra.mxu0 0.0
    %1160 = vmatprep.subr.mxu0 0.0
    %1161 = vmatpush2.msra.mxu0 0.0
    %1162 = vmatprep.subr.mxu0 0.0
    %1163 = vmatpush2.msra.mxu0 0.0
    %1164 = vmatprep.subr.mxu0 0.0
    %1165 = vmatpush2.msra.mxu0 0.0
    %1166 = vmatprep.subr.mxu0 0.0
    %1167 = vmatpush2.msra.mxu0 0.0
    %1168 = vmatprep.subr.mxu0 0.0
    %1169 = vmatpush2.msra.mxu0 0.0
    %1170 = vmatprep.subr.mxu0 0.0
    %1171 = vmatpush2.msra.mxu0 0.0
    %1172 = vmatprep.subr.mxu0 0.0
    %1173 = vmatpush2.msra.mxu0 0.0
    %1174 = vmatprep.subr.mxu0 0.0
    %1175 = vmatpush2.msra.mxu0 0.0
    %1176 = vmatprep.subr.mxu0 0.0
    %1177 = vmatpush2.msra.mxu0 0.0
    %1178 = vmatprep.subr.mxu0 0.0
    %1179 = vmatpush2.msra.mxu0 0.0
    %1180 = vmatprep.subr.mxu0 0.0
    %1181 = vmatpush2.msra.mxu0 0.0
    %1182 = vmatprep.subr.mxu0 0.0
    %1183 = vmatpush2.msra.mxu0 0.0
    %1184 = vmatprep.subr.mxu0 0.0
    %1185 = vmatpush2.msra.mxu0 0.0
    %1186 = vmatprep.mubr.f32.mxu0 0.0
    %1187 = vmatmul.mubr.f32.gmra.mxu0 %v1120
    %v1188 = vpop.f32.mrf.mxu0
    %v1189 = vadd.f32 %v164, %v1188
    %v1190 = vpop.f32.mrf.mxu0
    %1191 = vdwg.mxu0
    %v1192 = vxor.u32 %v1189, 2147483648
    %v1193 = vmul.f32 %v1192, 1.442695
    %v1194 = vpow.pop %v1193
    %v1195 = vadd.f32 %v1194, 1.0
    %v1196 = vrcp.pop %v1195
    %v1197 = vmul.f32 1.0, %v1196
    %v1198 = vtanh.pop %v1189
    %v1199 = vmul.f32 %v1197, %v1000
    %1201 = vrot.lane.b32.xlu0 %v1198, 32
    %v1202 = vpop.permute.xlu0 %1201
    %v1204 = vmul.f32 %v1197, %v1202
    %1206 = vrot.lane.b32.xlu0 %v1204, 32
    %v1207 = vpop.permute.xlu0 %1206
    %v1209 = vadd.f32 %v1199, %v1207
    %v1210 = vtanh.pop %v1209
    %1212 = vrot.lane.b32.xlu0 %v1210, 32
    %v1213 = vpop.permute.xlu0 %1212
    %v1215 = vmul.f32 %v1197, %v1213
    %v1216 = vsel %vm166, %v1112, 0
    %1218 = vmatprep.subr.mxu0 0.0
    %1219 = vmatpush1.msra.mxu0 0.0
    %1220 = vmatprep.subr.mxu0 0.0
    %1221 = vmatpush1.msra.mxu0 0.0
    %1222 = vmatprep.subr.mxu0 0.0
    %1223 = vmatpush1.msra.mxu0 0.0
    %1224 = vmatprep.subr.mxu0 0.0
    %1225 = vmatpush1.msra.mxu0 0.0
    %1226 = vmatprep.subr.mxu0 0.0
    %1227 = vmatpush1.msra.mxu0 0.0
    %1228 = vmatprep.subr.mxu0 0.0
    %1229 = vmatpush1.msra.mxu0 0.0
    %1230 = vmatprep.subr.mxu0 0.0
    %1231 = vmatpush1.msra.mxu0 0.0
    %1232 = vmatprep.subr.mxu0 0.0
    %1233 = vmatpush1.msra.mxu0 0.0
    %1234 = vmatprep.subr.mxu0 0.0
    %1235 = vmatpush1.msra.mxu0 0.0
    %1236 = vmatprep.subr.mxu0 0.0
    %1237 = vmatpush1.msra.mxu0 0.0
    %1238 = vmatprep.subr.mxu0 0.0
    %1239 = vmatpush1.msra.mxu0 0.0
    %1240 = vmatprep.subr.mxu0 0.0
    %1241 = vmatpush1.msra.mxu0 0.0
    %1242 = vmatprep.subr.mxu0 0.0
    %1243 = vmatpush1.msra.mxu0 %v54
    %1244 = vmatprep.subr.mxu0 0.0
    %1245 = vmatpush1.msra.mxu0 %v53
    %1246 = vmatprep.subr.mxu0 0.0
    %1247 = vmatpush1.msra.mxu0 %v52
    %1248 = vmatprep.subr.mxu0 0.0
    %1249 = vmatpush1.msra.mxu0 %v51
    %1250 = vmatprep.subr.mxu0 0.0
    %1251 = vmatpush2.msra.mxu0 0.0
    %1252 = vmatprep.subr.mxu0 0.0
    %1253 = vmatpush2.msra.mxu0 0.0
    %1254 = vmatprep.subr.mxu0 0.0
    %1255 = vmatpush2.msra.mxu0 0.0
    %1256 = vmatprep.subr.mxu0 0.0
    %1257 = vmatpush2.msra.mxu0 0.0
    %1258 = vmatprep.subr.mxu0 0.0
    %1259 = vmatpush2.msra.mxu0 0.0
    %1260 = vmatprep.subr.mxu0 0.0
    %1261 = vmatpush2.msra.mxu0 0.0
    %1262 = vmatprep.subr.mxu0 0.0
    %1263 = vmatpush2.msra.mxu0 0.0
    %1264 = vmatprep.subr.mxu0 0.0
    %1265 = vmatpush2.msra.mxu0 0.0
    %1266 = vmatprep.subr.mxu0 0.0
    %1267 = vmatpush2.msra.mxu0 0.0
    %1268 = vmatprep.subr.mxu0 0.0
    %1269 = vmatpush2.msra.mxu0 0.0
    %1270 = vmatprep.subr.mxu0 0.0
    %1271 = vmatpush2.msra.mxu0 0.0
    %1272 = vmatprep.subr.mxu0 0.0
    %1273 = vmatpush2.msra.mxu0 0.0
    %1274 = vmatprep.subr.mxu0 0.0
    %1275 = vmatpush2.msra.mxu0 0.0
    %1276 = vmatprep.subr.mxu0 0.0
    %1277 = vmatpush2.msra.mxu0 0.0
    %1278 = vmatprep.subr.mxu0 0.0
    %1279 = vmatpush2.msra.mxu0 0.0
    %1280 = vmatprep.subr.mxu0 0.0
    %1281 = vmatpush2.msra.mxu0 0.0
    %1282 = vmatprep.mubr.f32.mxu0 0.0
    %1283 = vmatmul.mubr.f32.gmra.mxu0 %v1216
    %v1284 = vpop.f32.mrf.mxu0
    %v1285 = vadd.f32 0.0, %v1284
    %v1286 = vpop.f32.mrf.mxu0
    %1287 = vdwg.mxu0
    %v1289 = vrot.slane %v1285, 6
    %v1291 = vadd.f32 %v156, %v1289
    %v1292 = vxor.u32 %v1291, 2147483648
    %v1293 = vmul.f32 %v1292, 1.442695
    %v1294 = vpow.pop %v1293
    %v1295 = vadd.f32 %v1294, 1.0
    %v1296 = vrcp.pop %v1295
    %v1297 = vmul.f32 1.0, %v1296
    %v1298 = vtanh.pop %v1291
    %v1300 = vrot.slane %v1103, 6
    %v1302 = vmul.f32 %v1297, %v1300
    %1304 = vrot.lane.b32.xlu0 %v1298, 32
    %v1305 = vpop.permute.xlu0 %1304
    %v1307 = vmul.f32 %v1297, %v1305
    %1309 = vrot.lane.b32.xlu0 %v1307, 32
    %v1310 = vpop.permute.xlu0 %1309
    %v1312 = vadd.f32 %v1302, %v1310
    %v1313 = vtanh.pop %v1312
    %1315 = vrot.lane.b32.xlu0 %v1313, 32
    %v1316 = vpop.permute.xlu0 %1315
    %v1318 = vmul.f32 %v1297, %v1316
    %1320 = vrot.lane.b32.xlu0 %v1318, 64
    %v1321 = vpop.permute.xlu0 %1320
    %v1324 = vrot.slane %v1215, 6
    %1325 = vrot.lane.b32.xlu0 %v1324, 96
    %v1326 = vpop.permute.xlu0 %1325
    %v1328 = vsel %vm166, %v1321, %v1326
    %v1330 = vrot.slane %v1328, 2
    %v1331 = vsel %vm270, %v1330, 0
    %1333 = vmatprep.subr.mxu0 0.0
    %1334 = vmatpush1.msra.mxu0 0.0
    %1335 = vmatprep.subr.mxu0 0.0
    %1336 = vmatpush1.msra.mxu0 0.0
    %1337 = vmatprep.subr.mxu0 0.0
    %1338 = vmatpush1.msra.mxu0 0.0
    %1339 = vmatprep.subr.mxu0 0.0
    %1340 = vmatpush1.msra.mxu0 0.0
    %1341 = vmatprep.subr.mxu0 0.0
    %1342 = vmatpush1.msra.mxu0 0.0
    %1343 = vmatprep.subr.mxu0 0.0
    %1344 = vmatpush1.msra.mxu0 0.0
    %1345 = vmatprep.subr.mxu0 0.0
    %1346 = vmatpush1.msra.mxu0 0.0
    %1347 = vmatprep.subr.mxu0 0.0
    %1348 = vmatpush1.msra.mxu0 0.0
    %1349 = vmatprep.subr.mxu0 0.0
    %1350 = vmatpush1.msra.mxu0 %v62
    %1351 = vmatprep.subr.mxu0 0.0
    %1352 = vmatpush1.msra.mxu0 %v61
    %1353 = vmatprep.subr.mxu0 0.0
    %1354 = vmatpush1.msra.mxu0 %v60
    %1355 = vmatprep.subr.mxu0 0.0
    %1356 = vmatpush1.msra.mxu0 %v59
    %1357 = vmatprep.subr.mxu0 0.0
    %1358 = vmatpush1.msra.mxu0 %v58
    %1359 = vmatprep.subr.mxu0 0.0
    %1360 = vmatpush1.msra.mxu0 %v57
    %1361 = vmatprep.subr.mxu0 0.0
    %1362 = vmatpush1.msra.mxu0 %v56
    %1363 = vmatprep.subr.mxu0 0.0
    %1364 = vmatpush1.msra.mxu0 %v55
    %1365 = vmatprep.subr.mxu0 0.0
    %1366 = vmatpush2.msra.mxu0 0.0
    %1367 = vmatprep.subr.mxu0 0.0
    %1368 = vmatpush2.msra.mxu0 0.0
    %1369 = vmatprep.subr.mxu0 0.0
    %1370 = vmatpush2.msra.mxu0 0.0
    %1371 = vmatprep.subr.mxu0 0.0
    %1372 = vmatpush2.msra.mxu0 0.0
    %1373 = vmatprep.subr.mxu0 0.0
    %1374 = vmatpush2.msra.mxu0 0.0
    %1375 = vmatprep.subr.mxu0 0.0
    %1376 = vmatpush2.msra.mxu0 0.0
    %1377 = vmatprep.subr.mxu0 0.0
    %1378 = vmatpush2.msra.mxu0 0.0
    %1379 = vmatprep.subr.mxu0 0.0
    %1380 = vmatpush2.msra.mxu0 0.0
    %1381 = vmatprep.subr.mxu0 0.0
    %1382 = vmatpush2.msra.mxu0 0.0
    %1383 = vmatprep.subr.mxu0 0.0
    %1384 = vmatpush2.msra.mxu0 0.0
    %1385 = vmatprep.subr.mxu0 0.0
    %1386 = vmatpush2.msra.mxu0 0.0
    %1387 = vmatprep.subr.mxu0 0.0
    %1388 = vmatpush2.msra.mxu0 0.0
    %1389 = vmatprep.subr.mxu0 0.0
    %1390 = vmatpush2.msra.mxu0 0.0
    %1391 = vmatprep.subr.mxu0 0.0
    %1392 = vmatpush2.msra.mxu0 0.0
    %1393 = vmatprep.subr.mxu0 0.0
    %1394 = vmatpush2.msra.mxu0 0.0
    %1395 = vmatprep.subr.mxu0 0.0
    %1396 = vmatpush2.msra.mxu0 0.0
    %1397 = vmatprep.mubr.f32.mxu0 0.0
    %1398 = vmatmul.mubr.f32.gmra.mxu0 %v1331
    %v1399 = vpop.f32.mrf.mxu0
    %v1400 = vadd.f32 %v164, %v1399
    %v1401 = vpop.f32.mrf.mxu0
    %1402 = vdwg.mxu0
    %v1403 = vxor.u32 %v1400, 2147483648
    %v1404 = vmul.f32 %v1403, 1.442695
    %v1405 = vpow.pop %v1404
    %v1406 = vadd.f32 %v1405, 1.0
    %v1407 = vrcp.pop %v1406
    %v1408 = vmul.f32 1.0, %v1407
    %v1409 = vtanh.pop %v1400
    %v1410 = vmul.f32 %v1408, %v1209
    %1412 = vrot.lane.b32.xlu0 %v1409, 32
    %v1413 = vpop.permute.xlu0 %1412
    %v1415 = vmul.f32 %v1408, %v1413
    %1417 = vrot.lane.b32.xlu0 %v1415, 32
    %v1418 = vpop.permute.xlu0 %1417
    %v1420 = vadd.f32 %v1410, %v1418
    %v1421 = vtanh.pop %v1420
    %1423 = vrot.lane.b32.xlu0 %v1421, 32
    %v1424 = vpop.permute.xlu0 %1423
    %v1426 = vmul.f32 %v1408, %v1424
    %v1427 = vrot.slane %v1318, 2
    %1428 = vrot.lane.b32.xlu0 %v1427, 64
    %v1429 = vpop.permute.xlu0 %1428
    %v1430 = vsel %vm166, %v1429, 0
    %1432 = vmatprep.subr.mxu0 0.0
    %1433 = vmatpush1.msra.mxu0 0.0
    %1434 = vmatprep.subr.mxu0 0.0
    %1435 = vmatpush1.msra.mxu0 0.0
    %1436 = vmatprep.subr.mxu0 0.0
    %1437 = vmatpush1.msra.mxu0 0.0
    %1438 = vmatprep.subr.mxu0 0.0
    %1439 = vmatpush1.msra.mxu0 0.0
    %1440 = vmatprep.subr.mxu0 0.0
    %1441 = vmatpush1.msra.mxu0 0.0
    %1442 = vmatprep.subr.mxu0 0.0
    %1443 = vmatpush1.msra.mxu0 0.0
    %1444 = vmatprep.subr.mxu0 0.0
    %1445 = vmatpush1.msra.mxu0 0.0
    %1446 = vmatprep.subr.mxu0 0.0
    %1447 = vmatpush1.msra.mxu0 0.0
    %1448 = vmatprep.subr.mxu0 0.0
    %1449 = vmatpush1.msra.mxu0 0.0
    %1450 = vmatprep.subr.mxu0 0.0
    %1451 = vmatpush1.msra.mxu0 0.0
    %1452 = vmatprep.subr.mxu0 0.0
    %1453 = vmatpush1.msra.mxu0 0.0
    %1454 = vmatprep.subr.mxu0 0.0
    %1455 = vmatpush1.msra.mxu0 0.0
    %1456 = vmatprep.subr.mxu0 0.0
    %1457 = vmatpush1.msra.mxu0 %v54
    %1458 = vmatprep.subr.mxu0 0.0
    %1459 = vmatpush1.msra.mxu0 %v53
    %1460 = vmatprep.subr.mxu0 0.0
    %1461 = vmatpush1.msra.mxu0 %v52
    %1462 = vmatprep.subr.mxu0 0.0
    %1463 = vmatpush1.msra.mxu0 %v51
    %1464 = vmatprep.subr.mxu0 0.0
    %1465 = vmatpush2.msra.mxu0 0.0
    %1466 = vmatprep.subr.mxu0 0.0
    %1467 = vmatpush2.msra.mxu0 0.0
    %1468 = vmatprep.subr.mxu0 0.0
    %1469 = vmatpush2.msra.mxu0 0.0
    %1470 = vmatprep.subr.mxu0 0.0
    %1471 = vmatpush2.msra.mxu0 0.0
    %1472 = vmatprep.subr.mxu0 0.0
    %1473 = vmatpush2.msra.mxu0 0.0
    %1474 = vmatprep.subr.mxu0 0.0
    %1475 = vmatpush2.msra.mxu0 0.0
    %1476 = vmatprep.subr.mxu0 0.0
    %1477 = vmatpush2.msra.mxu0 0.0
    %1478 = vmatprep.subr.mxu0 0.0
    %1479 = vmatpush2.msra.mxu0 0.0
    %1480 = vmatprep.subr.mxu0 0.0
    %1481 = vmatpush2.msra.mxu0 0.0
    %1482 = vmatprep.subr.mxu0 0.0
    %1483 = vmatpush2.msra.mxu0 0.0
    %1484 = vmatprep.subr.mxu0 0.0
    %1485 = vmatpush2.msra.mxu0 0.0
    %1486 = vmatprep.subr.mxu0 0.0
    %1487 = vmatpush2.msra.mxu0 0.0
    %1488 = vmatprep.subr.mxu0 0.0
    %1489 = vmatpush2.msra.mxu0 0.0
    %1490 = vmatprep.subr.mxu0 0.0
    %1491 = vmatpush2.msra.mxu0 0.0
    %1492 = vmatprep.subr.mxu0 0.0
    %1493 = vmatpush2.msra.mxu0 0.0
    %1494 = vmatprep.subr.mxu0 0.0
    %1495 = vmatpush2.msra.mxu0 0.0
    %1496 = vmatprep.mubr.f32.mxu0 0.0
    %1497 = vmatmul.mubr.f32.gmra.mxu0 %v1430
    %v1498 = vpop.f32.mrf.mxu0
    %v1499 = vadd.f32 0.0, %v1498
    %v1500 = vpop.f32.mrf.mxu0
    %1501 = vdwg.mxu0
    %v1503 = vrot.slane %v1499, 4
    %v1505 = vadd.f32 %v156, %v1503
    %v1506 = vxor.u32 %v1505, 2147483648
    %v1507 = vmul.f32 %v1506, 1.442695
    %v1508 = vpow.pop %v1507
    %v1509 = vadd.f32 %v1508, 1.0
    %v1510 = vrcp.pop %v1509
    %v1511 = vmul.f32 1.0, %v1510
    %v1512 = vtanh.pop %v1505
    %v1514 = vrot.slane %v1312, 6
    %v1516 = vmul.f32 %v1511, %v1514
    %1518 = vrot.lane.b32.xlu0 %v1512, 32
    %v1519 = vpop.permute.xlu0 %1518
    %v1521 = vmul.f32 %v1511, %v1519
    %1523 = vrot.lane.b32.xlu0 %v1521, 32
    %v1524 = vpop.permute.xlu0 %1523
    %v1526 = vadd.f32 %v1516, %v1524
    %v1527 = vtanh.pop %v1526
    %1529 = vrot.lane.b32.xlu0 %v1527, 32
    %v1530 = vpop.permute.xlu0 %1529
    %v1532 = vmul.f32 %v1511, %v1530
    %1534 = vrot.lane.b32.xlu0 %v1532, 64
    %v1535 = vpop.permute.xlu0 %1534
    %v1538 = vrot.slane %v1426, 4
    %1539 = vrot.lane.b32.xlu0 %v1538, 96
    %v1540 = vpop.permute.xlu0 %1539
    %v1542 = vsel %vm166, %v1535, %v1540
    %v1544 = vrot.slane %v1542, 4
    %v1545 = vsel %vm270, %v1544, 0
    %1547 = vmatprep.subr.mxu0 0.0
    %1548 = vmatpush1.msra.mxu0 0.0
    %1549 = vmatprep.subr.mxu0 0.0
    %1550 = vmatpush1.msra.mxu0 0.0
    %1551 = vmatprep.subr.mxu0 0.0
    %1552 = vmatpush1.msra.mxu0 0.0
    %1553 = vmatprep.subr.mxu0 0.0
    %1554 = vmatpush1.msra.mxu0 0.0
    %1555 = vmatprep.subr.mxu0 0.0
    %1556 = vmatpush1.msra.mxu0 0.0
    %1557 = vmatprep.subr.mxu0 0.0
    %1558 = vmatpush1.msra.mxu0 0.0
    %1559 = vmatprep.subr.mxu0 0.0
    %1560 = vmatpush1.msra.mxu0 0.0
    %1561 = vmatprep.subr.mxu0 0.0
    %1562 = vmatpush1.msra.mxu0 0.0
    %1563 = vmatprep.subr.mxu0 0.0
    %1564 = vmatpush1.msra.mxu0 %v62
    %1565 = vmatprep.subr.mxu0 0.0
    %1566 = vmatpush1.msra.mxu0 %v61
    %1567 = vmatprep.subr.mxu0 0.0
    %1568 = vmatpush1.msra.mxu0 %v60
    %1569 = vmatprep.subr.mxu0 0.0
    %1570 = vmatpush1.msra.mxu0 %v59
    %1571 = vmatprep.subr.mxu0 0.0
    %1572 = vmatpush1.msra.mxu0 %v58
    %1573 = vmatprep.subr.mxu0 0.0
    %1574 = vmatpush1.msra.mxu0 %v57
    %1575 = vmatprep.subr.mxu0 0.0
    %1576 = vmatpush1.msra.mxu0 %v56
    %1577 = vmatprep.subr.mxu0 0.0
    %1578 = vmatpush1.msra.mxu0 %v55
    %1579 = vmatprep.subr.mxu0 0.0
    %1580 = vmatpush2.msra.mxu0 0.0
    %1581 = vmatprep.subr.mxu0 0.0
    %1582 = vmatpush2.msra.mxu0 0.0
    %1583 = vmatprep.subr.mxu0 0.0
    %1584 = vmatpush2.msra.mxu0 0.0
    %1585 = vmatprep.subr.mxu0 0.0
    %1586 = vmatpush2.msra.mxu0 0.0
    %1587 = vmatprep.subr.mxu0 0.0
    %1588 = vmatpush2.msra.mxu0 0.0
    %1589 = vmatprep.subr.mxu0 0.0
    %1590 = vmatpush2.msra.mxu0 0.0
    %1591 = vmatprep.subr.mxu0 0.0
    %1592 = vmatpush2.msra.mxu0 0.0
    %1593 = vmatprep.subr.mxu0 0.0
    %1594 = vmatpush2.msra.mxu0 0.0
    %1595 = vmatprep.subr.mxu0 0.0
    %1596 = vmatpush2.msra.mxu0 0.0
    %1597 = vmatprep.subr.mxu0 0.0
    %1598 = vmatpush2.msra.mxu0 0.0
    %1599 = vmatprep.subr.mxu0 0.0
    %1600 = vmatpush2.msra.mxu0 0.0
    %1601 = vmatprep.subr.mxu0 0.0
    %1602 = vmatpush2.msra.mxu0 0.0
    %1603 = vmatprep.subr.mxu0 0.0
    %1604 = vmatpush2.msra.mxu0 0.0
    %1605 = vmatprep.subr.mxu0 0.0
    %1606 = vmatpush2.msra.mxu0 0.0
    %1607 = vmatprep.subr.mxu0 0.0
    %1608 = vmatpush2.msra.mxu0 0.0
    %1609 = vmatprep.subr.mxu0 0.0
    %1610 = vmatpush2.msra.mxu0 0.0
    %1611 = vmatprep.mubr.f32.mxu0 0.0
    %1612 = vmatmul.mubr.f32.gmra.mxu0 %v1545
    %v1613 = vpop.f32.mrf.mxu0
    %v1614 = vadd.f32 %v164, %v1613
    %v1615 = vpop.f32.mrf.mxu0
    %1616 = vdwg.mxu0
    %v1617 = vxor.u32 %v1614, 2147483648
    %v1618 = vmul.f32 %v1617, 1.442695
    %v1619 = vpow.pop %v1618
    %v1620 = vadd.f32 %v1619, 1.0
    %v1621 = vrcp.pop %v1620
    %v1622 = vmul.f32 1.0, %v1621
    %v1623 = vtanh.pop %v1614
    %v1624 = vmul.f32 %v1622, %v1420
    %1626 = vrot.lane.b32.xlu0 %v1623, 32
    %v1627 = vpop.permute.xlu0 %1626
    %v1629 = vmul.f32 %v1622, %v1627
    %1631 = vrot.lane.b32.xlu0 %v1629, 32
    %v1632 = vpop.permute.xlu0 %1631
    %v1634 = vadd.f32 %v1624, %v1632
    %v1635 = vtanh.pop %v1634
    %1637 = vrot.lane.b32.xlu0 %v1635, 32
    %v1638 = vpop.permute.xlu0 %1637
    %v1640 = vmul.f32 %v1622, %v1638
    %v1641 = vrot.slane %v1532, 4
    %1642 = vrot.lane.b32.xlu0 %v1641, 64
    %v1643 = vpop.permute.xlu0 %1642
    %v1644 = vsel %vm166, %v1643, 0
    %1646 = vmatprep.subr.mxu0 0.0
    %1647 = vmatpush1.msra.mxu0 0.0
    %1648 = vmatprep.subr.mxu0 0.0
    %1649 = vmatpush1.msra.mxu0 0.0
    %1650 = vmatprep.subr.mxu0 0.0
    %1651 = vmatpush1.msra.mxu0 0.0
    %1652 = vmatprep.subr.mxu0 0.0
    %1653 = vmatpush1.msra.mxu0 0.0
    %1654 = vmatprep.subr.mxu0 0.0
    %1655 = vmatpush1.msra.mxu0 0.0
    %1656 = vmatprep.subr.mxu0 0.0
    %1657 = vmatpush1.msra.mxu0 0.0
    %1658 = vmatprep.subr.mxu0 0.0
    %1659 = vmatpush1.msra.mxu0 0.0
    %1660 = vmatprep.subr.mxu0 0.0
    %1661 = vmatpush1.msra.mxu0 0.0
    %1662 = vmatprep.subr.mxu0 0.0
    %1663 = vmatpush1.msra.mxu0 0.0
    %1664 = vmatprep.subr.mxu0 0.0
    %1665 = vmatpush1.msra.mxu0 0.0
    %1666 = vmatprep.subr.mxu0 0.0
    %1667 = vmatpush1.msra.mxu0 0.0
    %1668 = vmatprep.subr.mxu0 0.0
    %1669 = vmatpush1.msra.mxu0 0.0
    %1670 = vmatprep.subr.mxu0 0.0
    %1671 = vmatpush1.msra.mxu0 %v54
    %1672 = vmatprep.subr.mxu0 0.0
    %1673 = vmatpush1.msra.mxu0 %v53
    %1674 = vmatprep.subr.mxu0 0.0
    %1675 = vmatpush1.msra.mxu0 %v52
    %1676 = vmatprep.subr.mxu0 0.0
    %1677 = vmatpush1.msra.mxu0 %v51
    %1678 = vmatprep.subr.mxu0 0.0
    %1679 = vmatpush2.msra.mxu0 0.0
    %1680 = vmatprep.subr.mxu0 0.0
    %1681 = vmatpush2.msra.mxu0 0.0
    %1682 = vmatprep.subr.mxu0 0.0
    %1683 = vmatpush2.msra.mxu0 0.0
    %1684 = vmatprep.subr.mxu0 0.0
    %1685 = vmatpush2.msra.mxu0 0.0
    %1686 = vmatprep.subr.mxu0 0.0
    %1687 = vmatpush2.msra.mxu0 0.0
    %1688 = vmatprep.subr.mxu0 0.0
    %1689 = vmatpush2.msra.mxu0 0.0
    %1690 = vmatprep.subr.mxu0 0.0
    %1691 = vmatpush2.msra.mxu0 0.0
    %1692 = vmatprep.subr.mxu0 0.0
    %1693 = vmatpush2.msra.mxu0 0.0
    %1694 = vmatprep.subr.mxu0 0.0
    %1695 = vmatpush2.msra.mxu0 0.0
    %1696 = vmatprep.subr.mxu0 0.0
    %1697 = vmatpush2.msra.mxu0 0.0
    %1698 = vmatprep.subr.mxu0 0.0
    %1699 = vmatpush2.msra.mxu0 0.0
    %1700 = vmatprep.subr.mxu0 0.0
    %1701 = vmatpush2.msra.mxu0 0.0
    %1702 = vmatprep.subr.mxu0 0.0
    %1703 = vmatpush2.msra.mxu0 0.0
    %1704 = vmatprep.subr.mxu0 0.0
    %1705 = vmatpush2.msra.mxu0 0.0
    %1706 = vmatprep.subr.mxu0 0.0
    %1707 = vmatpush2.msra.mxu0 0.0
    %1708 = vmatprep.subr.mxu0 0.0
    %1709 = vmatpush2.msra.mxu0 0.0
    %1710 = vmatprep.mubr.f32.mxu0 0.0
    %1711 = vmatmul.mubr.f32.gmra.mxu0 %v1644
    %v1712 = vpop.f32.mrf.mxu0
    %v1713 = vadd.f32 0.0, %v1712
    %v1714 = vpop.f32.mrf.mxu0
    %1715 = vdwg.mxu0
    %v1717 = vrot.slane %v1713, 2
    %v1719 = vadd.f32 %v156, %v1717
    %v1720 = vxor.u32 %v1719, 2147483648
    %v1721 = vmul.f32 %v1720, 1.442695
    %v1722 = vpow.pop %v1721
    %v1723 = vadd.f32 %v1722, 1.0
    %v1724 = vrcp.pop %v1723
    %v1725 = vmul.f32 1.0, %v1724
    %v1726 = vtanh.pop %v1719
    %v1728 = vrot.slane %v1526, 6
    %v1730 = vmul.f32 %v1725, %v1728
    %1732 = vrot.lane.b32.xlu0 %v1726, 32
    %v1733 = vpop.permute.xlu0 %1732
    %v1735 = vmul.f32 %v1725, %v1733
    %1737 = vrot.lane.b32.xlu0 %v1735, 32
    %v1738 = vpop.permute.xlu0 %1737
    %v1740 = vadd.f32 %v1730, %v1738
    %v1741 = vtanh.pop %v1740
    %1743 = vrot.lane.b32.xlu0 %v1741, 32
    %v1744 = vpop.permute.xlu0 %1743
    %v1746 = vmul.f32 %v1725, %v1744
    %1748 = vrot.lane.b32.xlu0 %v1746, 64
    %v1749 = vpop.permute.xlu0 %1748
    %v1752 = vrot.slane %v1640, 2
    %1753 = vrot.lane.b32.xlu0 %v1752, 96
    %v1754 = vpop.permute.xlu0 %1753
    %v1756 = vsel %vm166, %v1749, %v1754
    %v1758 = vrot.slane %v1756, 6
    %v1759 = vsel %vm270, %v1758, 0
    %1761 = vmatprep.subr.mxu0 0.0
    %1762 = vmatpush1.msra.mxu0 0.0
    %1763 = vmatprep.subr.mxu0 0.0
    %1764 = vmatpush1.msra.mxu0 0.0
    %1765 = vmatprep.subr.mxu0 0.0
    %1766 = vmatpush1.msra.mxu0 0.0
    %1767 = vmatprep.subr.mxu0 0.0
    %1768 = vmatpush1.msra.mxu0 0.0
    %1769 = vmatprep.subr.mxu0 0.0
    %1770 = vmatpush1.msra.mxu0 0.0
    %1771 = vmatprep.subr.mxu0 0.0
    %1772 = vmatpush1.msra.mxu0 0.0
    %1773 = vmatprep.subr.mxu0 0.0
    %1774 = vmatpush1.msra.mxu0 0.0
    %1775 = vmatprep.subr.mxu0 0.0
    %1776 = vmatpush1.msra.mxu0 0.0
    %1777 = vmatprep.subr.mxu0 0.0
    %1778 = vmatpush1.msra.mxu0 %v62
    %1779 = vmatprep.subr.mxu0 0.0
    %1780 = vmatpush1.msra.mxu0 %v61
    %1781 = vmatprep.subr.mxu0 0.0
    %1782 = vmatpush1.msra.mxu0 %v60
    %1783 = vmatprep.subr.mxu0 0.0
    %1784 = vmatpush1.msra.mxu0 %v59
    %1785 = vmatprep.subr.mxu0 0.0
    %1786 = vmatpush1.msra.mxu0 %v58
    %1787 = vmatprep.subr.mxu0 0.0
    %1788 = vmatpush1.msra.mxu0 %v57
    %1789 = vmatprep.subr.mxu0 0.0
    %1790 = vmatpush1.msra.mxu0 %v56
    %1791 = vmatprep.subr.mxu0 0.0
    %1792 = vmatpush1.msra.mxu0 %v55
    %1793 = vmatprep.subr.mxu0 0.0
    %1794 = vmatpush2.msra.mxu0 0.0
    %1795 = vmatprep.subr.mxu0 0.0
    %1796 = vmatpush2.msra.mxu0 0.0
    %1797 = vmatprep.subr.mxu0 0.0
    %1798 = vmatpush2.msra.mxu0 0.0
    %1799 = vmatprep.subr.mxu0 0.0
    %1800 = vmatpush2.msra.mxu0 0.0
    %1801 = vmatprep.subr.mxu0 0.0
    %1802 = vmatpush2.msra.mxu0 0.0
    %1803 = vmatprep.subr.mxu0 0.0
    %1804 = vmatpush2.msra.mxu0 0.0
    %1805 = vmatprep.subr.mxu0 0.0
    %1806 = vmatpush2.msra.mxu0 0.0
    %1807 = vmatprep.subr.mxu0 0.0
    %1808 = vmatpush2.msra.mxu0 0.0
    %1809 = vmatprep.subr.mxu0 0.0
    %1810 = vmatpush2.msra.mxu0 0.0
    %1811 = vmatprep.subr.mxu0 0.0
    %1812 = vmatpush2.msra.mxu0 0.0
    %1813 = vmatprep.subr.mxu0 0.0
    %1814 = vmatpush2.msra.mxu0 0.0
    %1815 = vmatprep.subr.mxu0 0.0
    %1816 = vmatpush2.msra.mxu0 0.0
    %1817 = vmatprep.subr.mxu0 0.0
    %1818 = vmatpush2.msra.mxu0 0.0
    %1819 = vmatprep.subr.mxu0 0.0
    %1820 = vmatpush2.msra.mxu0 0.0
    %1821 = vmatprep.subr.mxu0 0.0
    %1822 = vmatpush2.msra.mxu0 0.0
    %1823 = vmatprep.subr.mxu0 0.0
    %1824 = vmatpush2.msra.mxu0 0.0
    %1825 = vmatprep.mubr.f32.mxu0 0.0
    %1826 = vmatmul.mubr.f32.gmra.mxu0 %v1759
    %v1827 = vpop.f32.mrf.mxu0
    %v1828 = vadd.f32 %v164, %v1827
    %v1829 = vpop.f32.mrf.mxu0
    %1830 = vdwg.mxu0
    %v1831 = vxor.u32 %v1828, 2147483648
    %v1832 = vmul.f32 %v1831, 1.442695
    %v1833 = vpow.pop %v1832
    %v1834 = vadd.f32 %v1833, 1.0
    %v1835 = vrcp.pop %v1834
    %v1836 = vmul.f32 1.0, %v1835
    %v1837 = vtanh.pop %v1828
    %v1838 = vmul.f32 %v1836, %v1634
    %1840 = vrot.lane.b32.xlu0 %v1837, 32
    %v1841 = vpop.permute.xlu0 %1840
    %v1843 = vmul.f32 %v1836, %v1841
    %1845 = vrot.lane.b32.xlu0 %v1843, 32
    %v1846 = vpop.permute.xlu0 %1845
    %v1848 = vadd.f32 %v1838, %v1846
    %v1849 = vtanh.pop %v1848
    %1851 = vrot.lane.b32.xlu0 %v1849, 32
    %v1852 = vpop.permute.xlu0 %1851
    %v1854 = vmul.f32 %v1836, %v1852
    %v1855 = vld [vmem:[%s6] sm:$0xff]
    %v1856 = vld [vmem:[%s6 + $0x8] sm:$0xff]
    %v1857 = vld [vmem:[%s6 + $0x10] sm:$0xff]
    %v1858 = vld [vmem:[%s6 + $0x18] sm:$0xff]
    %v1859 = vld [vmem:[%s7] sm:$0x1]
    %v1861 = vlaneseq
    %v1862 = vshrl.u32 %v1861, 7
    %v1863 = vsub.s32 0, %v1862
    %v1864 = vrot.slane %v1859, %v1863
    %1867 = vrot.lane.b32.xlu0 %v1854, 64
    %v1868 = vpop.permute.xlu0 %1867
    %v1869 = vsel %vm166, %v1868, 0
    %1871 = vmatprep.subr.mxu0 0.0
    %1872 = vmatpush1.msra.mxu0 0.0
    %1873 = vmatprep.subr.mxu0 0.0
    %1874 = vmatpush1.msra.mxu0 0.0
    %1875 = vmatprep.subr.mxu0 0.0
    %1876 = vmatpush1.msra.mxu0 0.0
    %1877 = vmatprep.subr.mxu0 0.0
    %1878 = vmatpush1.msra.mxu0 0.0
    %1879 = vmatprep.subr.mxu0 0.0
    %1880 = vmatpush1.msra.mxu0 0.0
    %1881 = vmatprep.subr.mxu0 0.0
    %1882 = vmatpush1.msra.mxu0 0.0
    %1883 = vmatprep.subr.mxu0 0.0
    %1884 = vmatpush1.msra.mxu0 0.0
    %1885 = vmatprep.subr.mxu0 0.0
    %1886 = vmatpush1.msra.mxu0 0.0
    %1887 = vmatprep.subr.mxu0 0.0
    %1888 = vmatpush1.msra.mxu0 0.0
    %1889 = vmatprep.subr.mxu0 0.0
    %1890 = vmatpush1.msra.mxu0 0.0
    %1891 = vmatprep.subr.mxu0 0.0
    %1892 = vmatpush1.msra.mxu0 0.0
    %1893 = vmatprep.subr.mxu0 0.0
    %1894 = vmatpush1.msra.mxu0 0.0
    %1895 = vmatprep.subr.mxu0 0.0
    %1896 = vmatpush1.msra.mxu0 %v1858
    %1897 = vmatprep.subr.mxu0 0.0
    %1898 = vmatpush1.msra.mxu0 %v1857
    %1899 = vmatprep.subr.mxu0 0.0
    %1900 = vmatpush1.msra.mxu0 %v1856
    %1901 = vmatprep.subr.mxu0 0.0
    %1902 = vmatpush1.msra.mxu0 %v1855
    %1903 = vmatprep.subr.mxu0 0.0
    %1904 = vmatpush2.msra.mxu0 0.0
    %1905 = vmatprep.subr.mxu0 0.0
    %1906 = vmatpush2.msra.mxu0 0.0
    %1907 = vmatprep.subr.mxu0 0.0
    %1908 = vmatpush2.msra.mxu0 0.0
    %1909 = vmatprep.subr.mxu0 0.0
    %1910 = vmatpush2.msra.mxu0 0.0
    %1911 = vmatprep.subr.mxu0 0.0
    %1912 = vmatpush2.msra.mxu0 0.0
    %1913 = vmatprep.subr.mxu0 0.0
    %1914 = vmatpush2.msra.mxu0 0.0
    %1915 = vmatprep.subr.mxu0 0.0
    %1916 = vmatpush2.msra.mxu0 0.0
    %1917 = vmatprep.subr.mxu0 0.0
    %1918 = vmatpush2.msra.mxu0 0.0
    %1919 = vmatprep.subr.mxu0 0.0
    %1920 = vmatpush2.msra.mxu0 0.0
    %1921 = vmatprep.subr.mxu0 0.0
    %1922 = vmatpush2.msra.mxu0 0.0
    %1923 = vmatprep.subr.mxu0 0.0
    %1924 = vmatpush2.msra.mxu0 0.0
    %1925 = vmatprep.subr.mxu0 0.0
    %1926 = vmatpush2.msra.mxu0 0.0
    %1927 = vmatprep.subr.mxu0 0.0
    %1928 = vmatpush2.msra.mxu0 0.0
    %1929 = vmatprep.subr.mxu0 0.0
    %1930 = vmatpush2.msra.mxu0 0.0
    %1931 = vmatprep.subr.mxu0 0.0
    %1932 = vmatpush2.msra.mxu0 0.0
    %1933 = vmatprep.subr.mxu0 0.0
    %1934 = vmatpush2.msra.mxu0 0.0
    %1935 = vmatprep.mubr.f32.mxu0 0.0
    %1936 = vmatmul.mubr.f32.gmra.mxu0 %v1869
    %v1937 = vpop.f32.mrf.mxu0
    %v1938 = vadd.f32 %v1864, %v1937
    %v1939 = vpop.f32.mrf.mxu0
    %1940 = vdwg.mxu0
    %v1941 = vmax.f32 %v1938, 0.0
    %v1942 = vld [vmem:[%s8] sm:$0xff]
    %v1943 = vld [vmem:[%s8 + $0x8] sm:$0xff]
    %v1944 = vld [vmem:[#allocation2] sm:$0x1]
    %v1946 = vlaneseq
    %v1947 = vshrl.u32 %v1946, 7
    %v1948 = vsub.s32 0, %v1947
    %v1949 = vrot.slane %v1944, %v1948
    %vm1951 = vcmask 130048
    %v1953 = vsel %vm1951, %v1941, 0
    %1955 = vmatprep.subr.mxu0 0.0
    %1956 = vmatpush1.msra.mxu0 0.0
    %1957 = vmatprep.subr.mxu0 0.0
    %1958 = vmatpush1.msra.mxu0 0.0
    %1959 = vmatprep.subr.mxu0 0.0
    %1960 = vmatpush1.msra.mxu0 0.0
    %1961 = vmatprep.subr.mxu0 0.0
    %1962 = vmatpush1.msra.mxu0 0.0
    %1963 = vmatprep.subr.mxu0 0.0
    %1964 = vmatpush1.msra.mxu0 0.0
    %1965 = vmatprep.subr.mxu0 0.0
    %1966 = vmatpush1.msra.mxu0 0.0
    %1967 = vmatprep.subr.mxu0 0.0
    %1968 = vmatpush1.msra.mxu0 0.0
    %1969 = vmatprep.subr.mxu0 0.0
    %1970 = vmatpush1.msra.mxu0 0.0
    %1971 = vmatprep.subr.mxu0 0.0
    %1972 = vmatpush1.msra.mxu0 0.0
    %1973 = vmatprep.subr.mxu0 0.0
    %1974 = vmatpush1.msra.mxu0 0.0
    %1975 = vmatprep.subr.mxu0 0.0
    %1976 = vmatpush1.msra.mxu0 0.0
    %1977 = vmatprep.subr.mxu0 0.0
    %1978 = vmatpush1.msra.mxu0 0.0
    %1979 = vmatprep.subr.mxu0 0.0
    %1980 = vmatpush1.msra.mxu0 0.0
    %1981 = vmatprep.subr.mxu0 0.0
    %1982 = vmatpush1.msra.mxu0 0.0
    %1983 = vmatprep.subr.mxu0 0.0
    %1984 = vmatpush1.msra.mxu0 %v1943
    %1985 = vmatprep.subr.mxu0 0.0
    %1986 = vmatpush1.msra.mxu0 %v1942
    %1987 = vmatprep.subr.mxu0 0.0
    %1988 = vmatpush2.msra.mxu0 0.0
    %1989 = vmatprep.subr.mxu0 0.0
    %1990 = vmatpush2.msra.mxu0 0.0
    %1991 = vmatprep.subr.mxu0 0.0
    %1992 = vmatpush2.msra.mxu0 0.0
    %1993 = vmatprep.subr.mxu0 0.0
    %1994 = vmatpush2.msra.mxu0 0.0
    %1995 = vmatprep.subr.mxu0 0.0
    %1996 = vmatpush2.msra.mxu0 0.0
    %1997 = vmatprep.subr.mxu0 0.0
    %1998 = vmatpush2.msra.mxu0 0.0
    %1999 = vmatprep.subr.mxu0 0.0
    %2000 = vmatpush2.msra.mxu0 0.0
    %2001 = vmatprep.subr.mxu0 0.0
    %2002 = vmatpush2.msra.mxu0 0.0
    %2003 = vmatprep.subr.mxu0 0.0
    %2004 = vmatpush2.msra.mxu0 0.0
    %2005 = vmatprep.subr.mxu0 0.0
    %2006 = vmatpush2.msra.mxu0 0.0
    %2007 = vmatprep.subr.mxu0 0.0
    %2008 = vmatpush2.msra.mxu0 0.0
    %2009 = vmatprep.subr.mxu0 0.0
    %2010 = vmatpush2.msra.mxu0 0.0
    %2011 = vmatprep.subr.mxu0 0.0
    %2012 = vmatpush2.msra.mxu0 0.0
    %2013 = vmatprep.subr.mxu0 0.0
    %2014 = vmatpush2.msra.mxu0 0.0
    %2015 = vmatprep.subr.mxu0 0.0
    %2016 = vmatpush2.msra.mxu0 0.0
    %2017 = vmatprep.subr.mxu0 0.0
    %2018 = vmatpush2.msra.mxu0 0.0
    %2019 = vmatprep.mubr.f32.mxu0 0.0
    %2020 = vmatmul.mubr.f32.gmra.mxu0 %v1953
    %v2021 = vpop.f32.mrf.mxu0
    %v2022 = vadd.f32 %v1949, %v2021
    %v2023 = vpop.f32.mrf.mxu0
    %2024 = vdwg.mxu0
    %vm2025 = vcmask 1024
    %2026 = vst.msk [vmem:[%s10] sm:$0x3] %vm2025, %v2022
    // Predicated region
    $region46: #{tpu_custom_call.1} parent=1 // pred_check
      _
    $region47: #{tpu_custom_call.1} parent=1 // pred_check_branch
      %2028 = sbr.rel (0) target = $region49
    $region48: #{tpu_custom_call.1} parent=1 // pred_region
      _
    $region49: #{tpu_custom_call.1} parent=1 // pred_fallthru
      _
    // Predicated region
    $region50: #{tpu_custom_call.1} parent=1 // pred_check
      _
    $region51: #{tpu_custom_call.1} parent=1 // pred_check_branch
      %2030 = sbr.rel (0) target = $region53
    $region52: #{tpu_custom_call.1} parent=1 // pred_region
      _
    $region53: #{tpu_custom_call.1} parent=1 // pred_fallthru
      _
    %2031 = vsyncpa [#allocation4], 1

</llo_original>
